<compile_context>
chip_gen: v6e
topology: v6e:2x2x1
jax: 0.10.0
libtpu: 0.0.40
codegen_flags: <defaults>
</compile_context>

<pallas_src>
import functools

import jax
import jax.numpy as jnp
from jax import lax
from jax.experimental import pallas as pl
from jax.experimental.pallas import tpu as pltpu

_VMEM_LIMIT_BYTES = 48 * 1024 * 1024  # <= v7x physical VMEM; plenty everywhere


def _pick_tile(n, cap):
    """Largest 'nice' tile <= cap that divides n (falls back to full n)."""
    for t in (2048, 1024, 512, 256, 128, 64, 32, 16, 8):
        if t <= cap and t <= n and n % t == 0:
            return t
    return n


# --------------------- Kernel 1: LayerNorm + QKV projection ---------------------
def _ln_qkv_kernel(x_ref, gamma_ref, beta_ref, wqkv_ref, q_ref, k_ref, v_ref,
                   *, eps, inner):
    """x_ref: (1, TN, D); wqkv_ref: (D, 3*inner) bf16 (Q columns pre-scaled).

    Writes q/k/v refs: (1, TN, inner) bf16 each (no host-side split needed).
    """
    x = x_ref[0].astype(jnp.float32)                          # (TN, D)
    mean = jnp.mean(x, axis=-1, keepdims=True)
    var = jnp.mean((x - mean) * (x - mean), axis=-1, keepdims=True)
    xn = (x - mean) * lax.rsqrt(var + eps)
    xn = xn * gamma_ref[0] + beta_ref[0]                      # f32 LN output

    qkv = jnp.dot(xn.astype(jnp.bfloat16), wqkv_ref[...],
                  preferred_element_type=jnp.float32)         # bf16 MXU, f32 acc
    q_ref[0] = qkv[:, :inner].astype(q_ref.dtype)
    k_ref[0] = qkv[:, inner:2 * inner].astype(k_ref.dtype)
    v_ref[0] = qkv[:, 2 * inner:].astype(v_ref.dtype)


# ------------- Kernel 2: flash attention + fused output projection -------------
def _flash_attn_proj_kernel(q_ref, k_ref, v_ref, wout_ref, bout_ref, o_ref,
                            m_ref, l_ref, acc_ref, *, heads, dim_head):
    """Grid: (B, N/TQ, N/TK); KV axis is the reduction ("arbitrary").

    q_ref: (1, TQ, inner) bf16 (scale folded in)   k/v_ref: (1, TK, inner) bf16
    wout_ref: (inner, D) bf16 (resident)           bout_ref: (1, D) f32
    o_ref: (1, TQ, D)
    scratch: m (TQ, heads), l (TQ, heads), acc (TQ, inner), all f32.
    """
    kv = pl.program_id(2)
    nkv = pl.num_programs(2)

    @pl.when(kv == 0)
    def _():
        m_ref[...] = jnp.full(m_ref.shape, -jnp.inf, dtype=jnp.float32)
        l_ref[...] = jnp.zeros(l_ref.shape, dtype=jnp.float32)
        acc_ref[...] = jnp.zeros(acc_ref.shape, dtype=jnp.float32)

    q = q_ref[0]                                              # (TQ, inner) bf16
    k = k_ref[0]                                              # (TK, inner) bf16
    v = v_ref[0]                                              # (TK, inner) bf16

    # All heads processed back-to-back inside one grid step (static unroll).
    for h in range(heads):
        sl = slice(h * dim_head, (h + 1) * dim_head)
        # s = (q*scale) @ k^T for this head, contraction over dim_head.
        s = lax.dot_general(q[:, sl], k[:, sl], (((1,), (1,)), ((), ())),
                            preferred_element_type=jnp.float32)   # (TQ, TK) f32

        m_prev = m_ref[:, h:h + 1]
        m_new = jnp.maximum(m_prev, jnp.max(s, axis=-1, keepdims=True))
        alpha = jnp.exp(m_prev - m_new)                            # (TQ, 1)
        p = jnp.exp(s - m_new)                                     # (TQ, TK) f32
        l_ref[:, h:h + 1] = alpha * l_ref[:, h:h + 1] + jnp.sum(
            p, axis=-1, keepdims=True)
        acc_ref[:, sl] = alpha * acc_ref[:, sl] + jnp.dot(
            p.astype(v.dtype), v[:, sl], preferred_element_type=jnp.float32)
        m_ref[:, h:h + 1] = m_new

    @pl.when(kv == nkv - 1)
    def _():
        # Normalize each head, then one full-`inner` contraction into W_out
        # (lane-dense (TQ, D) output), add bias, store once.
        for h in range(heads):
            sl = slice(h * dim_head, (h + 1) * dim_head)
            acc_ref[:, sl] = acc_ref[:, sl] / l_ref[:, h:h + 1]
        out = jnp.dot(acc_ref[...].astype(jnp.bfloat16), wout_ref[...],
                      preferred_element_type=jnp.float32) + bout_ref[0]
        o_ref[0] = out.astype(o_ref.dtype)


# --------------------------------- wrapper ---------------------------------
@functools.partial(jax.jit, static_argnames=("heads", "dim_head", "eps"))
def attention_pallas(x, gamma, beta, w_qkv_t, w_out_t, b_out,
                     *, heads, dim_head, eps=1e-5):
    """x: (B, N, D).  w_qkv_t: (D, 3*inner) (pre-transposed), w_out_t: (inner, D)."""
    B, N, D = x.shape
    inner = heads * dim_head
    scale = dim_head ** -0.5

    # --- parameter prep (once, under jit): fold softmax scale into Q columns,
    #     cast matmul weights to bf16. ---
    col_scale = jnp.concatenate([jnp.full((inner,), scale, jnp.float32),
                                 jnp.ones((2 * inner,), jnp.float32)])
    wqkv_bf = (w_qkv_t.astype(jnp.float32) * col_scale[None, :]).astype(jnp.bfloat16)
    wout_bf = w_out_t.astype(jnp.bfloat16)                    # (inner, D)
    gamma2 = gamma.reshape(1, D).astype(jnp.float32)
    beta2 = beta.reshape(1, D).astype(jnp.float32)
    bout2 = b_out.reshape(1, D).astype(jnp.float32)

    # --- stage 1: LayerNorm + qkv projection -> three (B, N, inner) bf16 slabs ---
    tn = _pick_tile(N, 512)
    q, k, v = pl.pallas_call(
        functools.partial(_ln_qkv_kernel, eps=eps, inner=inner),
        out_shape=(jax.ShapeDtypeStruct((B, N, inner), jnp.bfloat16),
                   jax.ShapeDtypeStruct((B, N, inner), jnp.bfloat16),
                   jax.ShapeDtypeStruct((B, N, inner), jnp.bfloat16)),
        grid=(B, N // tn),
        in_specs=[
            pl.BlockSpec((1, tn, D), lambda b, n: (b, n, 0)),          # x
            pl.BlockSpec((1, D), lambda b, n: (0, 0)),                 # gamma
            pl.BlockSpec((1, D), lambda b, n: (0, 0)),                 # beta
            pl.BlockSpec((D, 3 * inner), lambda b, n: (0, 0)),         # W_qkv^T
        ],
        out_specs=(
            pl.BlockSpec((1, tn, inner), lambda b, n: (b, n, 0)),
            pl.BlockSpec((1, tn, inner), lambda b, n: (b, n, 0)),
            pl.BlockSpec((1, tn, inner), lambda b, n: (b, n, 0)),
        ),
        compiler_params=pltpu.CompilerParams(
            dimension_semantics=("parallel", "parallel"),
            vmem_limit_bytes=_VMEM_LIMIT_BYTES),
    )(x, gamma2, beta2, wqkv_bf)

    # --- stage 2: flash attention (per-head online softmax) + fused out-proj ---
    tq = _pick_tile(N, 256)
    tk = _pick_tile(N, 1024)    # ViT-scale N -> single KV step (no rescaling)
    out = pl.pallas_call(
        functools.partial(_flash_attn_proj_kernel, heads=heads, dim_head=dim_head),
        out_shape=jax.ShapeDtypeStruct((B, N, D), x.dtype),
        grid=(B, N // tq, N // tk),
        in_specs=[
            pl.BlockSpec((1, tq, inner), lambda b, qi, kv: (b, qi, 0)),   # Q
            pl.BlockSpec((1, tk, inner), lambda b, qi, kv: (b, kv, 0)),   # K
            pl.BlockSpec((1, tk, inner), lambda b, qi, kv: (b, kv, 0)),   # V
            pl.BlockSpec((inner, D), lambda b, qi, kv: (0, 0)),           # W_out (resident)
            pl.BlockSpec((1, D), lambda b, qi, kv: (0, 0)),               # b_out
        ],
        out_specs=pl.BlockSpec((1, tq, D), lambda b, qi, kv: (b, qi, 0)),
        scratch_shapes=[
            pltpu.VMEM((tq, heads), jnp.float32),     # running max m (per head)
            pltpu.VMEM((tq, heads), jnp.float32),     # running sum l (per head)
            pltpu.VMEM((tq, inner), jnp.float32),     # per-head accumulators
        ],
        compiler_params=pltpu.CompilerParams(
            dimension_semantics=("parallel", "parallel", "arbitrary"),
            vmem_limit_bytes=_VMEM_LIMIT_BYTES),
    )(q, k, v, wout_bf, bout2)

    return out


# ------------------------------- reference -------------------------------
def attention_reference(x, gamma, beta, w_qkv_t, w_out_t, b_out,
                        *, heads, dim_head, eps=1e-5):
    """Pure-JAX (f32) reference matching the PyTorch forward."""
    B, N, D = x.shape
    inner = heads * dim_head
    scale = dim_head ** -0.5

    mean = jnp.mean(x, axis=-1, keepdims=True)
    var = jnp.mean((x - mean) ** 2, axis=-1, keepdims=True)
    xn = (x - mean) / jnp.sqrt(var + eps) * gamma + beta

    qkv = xn @ w_qkv_t                                       # (B, N, 3*inner)
    q, k, v = jnp.split(qkv, 3, axis=-1)

    def to_heads(t):                                         # 'b n (h d) -> b h n d'
        return t.reshape(B, N, heads, dim_head).transpose(0, 2, 1, 3)

    q, k, v = map(to_heads, (q, k, v))
    dots = jnp.einsum("bhnd,bhmd->bhnm", q, k) * scale
    attn = jax.nn.softmax(dots, axis=-1)
    out = jnp.einsum("bhnm,bhmd->bhnd", attn, v)
    out = out.transpose(0, 2, 1, 3).reshape(B, N, inner)     # 'b h n d -> b n (h d)'
    return out @ w_out_t + b_out


if __name__ == "__main__":
    # Small shapes consistent with the module.
    B, N, D = 2, 8, 32
    HEADS, DIM_HEAD = 4, 16
    INNER = HEADS * DIM_HEAD

    key = jax.random.PRNGKey(0)
    kx, kqkv, kout, kbias = jax.random.split(key, 4)

    x = jax.random.normal(kx, (B, N, D), dtype=jnp.float32)

    # LayerNorm params at PyTorch defaults (ones/zeros); random linear weights.
    gamma = jnp.ones((D,), dtype=jnp.float32)
    beta = jnp.zeros((D,), dtype=jnp.float32)
    w_qkv_t = jax.random.normal(kqkv, (D, 3 * INNER), dtype=jnp.float32) * 0.05
    w_out_t = jax.random.normal(kout, (INNER, D), dtype=jnp.float32) * 0.05
    b_out = jax.random.normal(kbias, (D,), dtype=jnp.float32) * 0.01

    y = attention_pallas(x, gamma, beta, w_qkv_t, w_out_t, b_out,
                         heads=HEADS, dim_head=DIM_HEAD)
    y = jax.block_until_ready(y)

    y_ref = attention_reference(x, gamma, beta, w_qkv_t, w_out_t, b_out,
                                heads=HEADS, dim_head=DIM_HEAD)
    # bf16 MXU matmuls (Q/K/V stored in bf16) -> looser tolerance vs f32 reference.
    assert jnp.allclose(y, y_ref, atol=2e-2, rtol=2e-2), "mismatch vs JAX reference"

    print("KERNEL_OK")
</pallas_src>

<mosaic_0001>
module attributes {stable_mosaic.version = 11 : i64} {
  func.func @_ln_qkv_kernel(%arg0: i32, %arg1: i32, %arg2: memref<1x8x32xf32, #tpu.memory_space<vmem>>, %arg3: memref<1x32xf32, #tpu.memory_space<vmem>>, %arg4: memref<1x32xf32, #tpu.memory_space<vmem>>, %arg5: memref<32x192xbf16, #tpu.memory_space<vmem>>, %arg6: memref<1x8x64xbf16, #tpu.memory_space<vmem>>, %arg7: memref<1x8x64xbf16, #tpu.memory_space<vmem>>, %arg8: memref<1x8x64xbf16, #tpu.memory_space<vmem>>) attributes {dimension_semantics = [#tpu.dimension_semantics<parallel>, #tpu.dimension_semantics<parallel>], iteration_bounds = array<i64: 2, 1>, scalar_prefetch = 0 : i64, scratch_operands = 0 : i64, tpu.core_type = #tpu.core_type<tc>, window_params = [{transform_indices = @transform_0, window_bounds = array<i64: 1, 8, 32>}, {pipeline_mode = #tpu.pipeline_mode<synchronous>, transform_indices = @transform_1, window_bounds = array<i64: 1, 32>}, {pipeline_mode = #tpu.pipeline_mode<synchronous>, transform_indices = @transform_2, window_bounds = array<i64: 1, 32>}, {pipeline_mode = #tpu.pipeline_mode<synchronous>, transform_indices = @transform_3, window_bounds = array<i64: 32, 192>}, {transform_indices = @transform_4, window_bounds = array<i64: 1, 8, 64>}, {transform_indices = @transform_5, window_bounds = array<i64: 1, 8, 64>}, {transform_indices = @transform_6, window_bounds = array<i64: 1, 8, 64>}]} {
    %c0 = arith.constant 0 : index
    %c0_0 = arith.constant 0 : index
    %c0_1 = arith.constant 0 : index
    %0 = vector.load %arg2[%c0, %c0_0, %c0_1] : memref<1x8x32xf32, #tpu.memory_space<vmem>>, vector<1x8x32xf32>
    %1 = vector.shape_cast %0 : vector<1x8x32xf32> to vector<8x32xf32>
    %cst = arith.constant dense<0.000000e+00> : vector<8xf32>
    %2 = vector.multi_reduction <add>, %1, %cst [1] : vector<8x32xf32> to vector<8xf32>
    %3 = vector.shape_cast %2 : vector<8xf32> to vector<8x1xf32>
    %cst_2 = arith.constant 3.200000e+01 : f32
    %4 = vector.broadcast %cst_2 : f32 to vector<8x1xf32>
    %5 = arith.divf %3, %4 : vector<8x1xf32>
    %6 = vector.broadcast %5 : vector<8x1xf32> to vector<8x32xf32>
    %7 = arith.subf %1, %6 : vector<8x32xf32>
    %8 = vector.broadcast %5 : vector<8x1xf32> to vector<8x32xf32>
    %9 = arith.subf %1, %8 : vector<8x32xf32>
    %10 = arith.mulf %7, %9 : vector<8x32xf32>
    %cst_3 = arith.constant dense<0.000000e+00> : vector<8xf32>
    %11 = vector.multi_reduction <add>, %10, %cst_3 [1] : vector<8x32xf32> to vector<8xf32>
    %12 = vector.shape_cast %11 : vector<8xf32> to vector<8x1xf32>
    %cst_4 = arith.constant 3.200000e+01 : f32
    %13 = vector.broadcast %cst_4 : f32 to vector<8x1xf32>
    %14 = arith.divf %12, %13 : vector<8x1xf32>
    %15 = vector.broadcast %5 : vector<8x1xf32> to vector<8x32xf32>
    %16 = arith.subf %1, %15 : vector<8x32xf32>
    %cst_5 = arith.constant 9.99999974E-6 : f32
    %17 = vector.broadcast %cst_5 : f32 to vector<8x1xf32>
    %18 = arith.addf %14, %17 : vector<8x1xf32>
    %19 = math.rsqrt %18 : vector<8x1xf32>
    %20 = vector.broadcast %19 : vector<8x1xf32> to vector<8x32xf32>
    %21 = arith.mulf %16, %20 : vector<8x32xf32>
    %c0_6 = arith.constant 0 : index
    %c0_7 = arith.constant 0 : index
    %22 = vector.load %arg3[%c0_6, %c0_7] : memref<1x32xf32, #tpu.memory_space<vmem>>, vector<1x32xf32>
    %23 = vector.shape_cast %22 : vector<1x32xf32> to vector<32xf32>
    %24 = vector.shape_cast %23 : vector<32xf32> to vector<1x32xf32>
    %25 = vector.broadcast %24 : vector<1x32xf32> to vector<8x32xf32>
    %26 = arith.mulf %21, %25 : vector<8x32xf32>
    %c0_8 = arith.constant 0 : index
    %c0_9 = arith.constant 0 : index
    %27 = vector.load %arg4[%c0_8, %c0_9] : memref<1x32xf32, #tpu.memory_space<vmem>>, vector<1x32xf32>
    %28 = vector.shape_cast %27 : vector<1x32xf32> to vector<32xf32>
    %29 = vector.shape_cast %28 : vector<32xf32> to vector<1x32xf32>
    %30 = vector.broadcast %29 : vector<1x32xf32> to vector<8x32xf32>
    %31 = arith.addf %26, %30 : vector<8x32xf32>
    %32 = arith.truncf %31 : vector<8x32xf32> to vector<8x32xbf16>
    %c0_10 = arith.constant 0 : index
    %c0_11 = arith.constant 0 : index
    %33 = vector.load %arg5[%c0_10, %c0_11] : memref<32x192xbf16, #tpu.memory_space<vmem>>, vector<32x192xbf16>
    %cst_12 = arith.constant dense<0.000000e+00> : vector<8x192xf32>
    %34 = tpu.matmul %32, %33, %cst_12 {dimension_numbers = #tpu.dot_dimension_numbers<[1], [0], [0], [1], [0, 0, 1, 1], [], []>} : vector<8x32xbf16>, vector<32x192xbf16>, vector<8x192xf32> -> vector<8x192xf32>
    %35 = vector.extract_strided_slice %34 {offsets = [0, 0], sizes = [8, 64], strides = [1, 1]} : vector<8x192xf32> to vector<8x64xf32>
    %36 = arith.truncf %35 : vector<8x64xf32> to vector<8x64xbf16>
    %c0_13 = arith.constant 0 : index
    %c0_14 = arith.constant 0 : index
    %c0_15 = arith.constant 0 : index
    %37 = vector.load %arg6[%c0_13, %c0_14, %c0_15] : memref<1x8x64xbf16, #tpu.memory_space<vmem>>, vector<1x8x64xbf16>
    %38 = vector.shape_cast %37 : vector<1x8x64xbf16> to vector<8x64xbf16>
    %39 = vector.shape_cast %36 : vector<8x64xbf16> to vector<1x8x64xbf16>
    tpu.vector_store %arg6[%c0_13, %c0_14, %c0_15], %39 {strides = array<i32>} : memref<1x8x64xbf16, #tpu.memory_space<vmem>>, vector<1x8x64xbf16>,
    %40 = vector.extract_strided_slice %34 {offsets = [0, 64], sizes = [8, 64], strides = [1, 1]} : vector<8x192xf32> to vector<8x64xf32>
    %41 = arith.truncf %40 : vector<8x64xf32> to vector<8x64xbf16>
    %c0_16 = arith.constant 0 : index
    %c0_17 = arith.constant 0 : index
    %c0_18 = arith.constant 0 : index
    %42 = vector.load %arg7[%c0_16, %c0_17, %c0_18] : memref<1x8x64xbf16, #tpu.memory_space<vmem>>, vector<1x8x64xbf16>
    %43 = vector.shape_cast %42 : vector<1x8x64xbf16> to vector<8x64xbf16>
    %44 = vector.shape_cast %41 : vector<8x64xbf16> to vector<1x8x64xbf16>
    tpu.vector_store %arg7[%c0_16, %c0_17, %c0_18], %44 {strides = array<i32>} : memref<1x8x64xbf16, #tpu.memory_space<vmem>>, vector<1x8x64xbf16>,
    %45 = vector.extract_strided_slice %34 {offsets = [0, 128], sizes = [8, 64], strides = [1, 1]} : vector<8x192xf32> to vector<8x64xf32>
    %46 = arith.truncf %45 : vector<8x64xf32> to vector<8x64xbf16>
    %c0_19 = arith.constant 0 : index
    %c0_20 = arith.constant 0 : index
    %c0_21 = arith.constant 0 : index
    %47 = vector.load %arg8[%c0_19, %c0_20, %c0_21] : memref<1x8x64xbf16, #tpu.memory_space<vmem>>, vector<1x8x64xbf16>
    %48 = vector.shape_cast %47 : vector<1x8x64xbf16> to vector<8x64xbf16>
    %49 = vector.shape_cast %46 : vector<8x64xbf16> to vector<1x8x64xbf16>
    tpu.vector_store %arg8[%c0_19, %c0_20, %c0_21], %49 {strides = array<i32>} : memref<1x8x64xbf16, #tpu.memory_space<vmem>>, vector<1x8x64xbf16>,
    return
  }
  func.func @transform_0(%arg0: i32, %arg1: i32) -> (i32, i32, i32) {
    %c0_i32 = arith.constant 0 : i32
    %c0_i32_0 = arith.constant 0 : i32
    return %arg0, %arg1, %c0_i32 : i32, i32, i32
  }
  func.func @transform_1(%arg0: i32, %arg1: i32) -> (i32, i32) {
    %c0_i32 = arith.constant 0 : i32
    %c0_i32_0 = arith.constant 0 : i32
    %c0_i32_1 = arith.constant 0 : i32
    return %c0_i32, %c0_i32_0 : i32, i32
  }
  func.func @transform_2(%arg0: i32, %arg1: i32) -> (i32, i32) {
    %c0_i32 = arith.constant 0 : i32
    %c0_i32_0 = arith.constant 0 : i32
    %c0_i32_1 = arith.constant 0 : i32
    return %c0_i32, %c0_i32_0 : i32, i32
  }
  func.func @transform_3(%arg0: i32, %arg1: i32) -> (i32, i32) {
    %c0_i32 = arith.constant 0 : i32
    %c0_i32_0 = arith.constant 0 : i32
    %c0_i32_1 = arith.constant 0 : i32
    return %c0_i32, %c0_i32_0 : i32, i32
  }
  func.func @transform_4(%arg0: i32, %arg1: i32) -> (i32, i32, i32) {
    %c0_i32 = arith.constant 0 : i32
    %c0_i32_0 = arith.constant 0 : i32
    return %arg0, %arg1, %c0_i32 : i32, i32, i32
  }
  func.func @transform_5(%arg0: i32, %arg1: i32) -> (i32, i32, i32) {
    %c0_i32 = arith.constant 0 : i32
    %c0_i32_0 = arith.constant 0 : i32
    return %arg0, %arg1, %c0_i32 : i32, i32, i32
  }
  func.func @transform_6(%arg0: i32, %arg1: i32) -> (i32, i32, i32) {
    %c0_i32 = arith.constant 0 : i32
    %c0_i32_0 = arith.constant 0 : i32
    return %arg0, %arg1, %c0_i32 : i32, i32, i32
  }
}

module attributes {stable_mosaic.version = 11 : i64} {
  func.func @_flash_attn_proj_kernel(%arg0: i32, %arg1: i32, %arg2: i32, %arg3: memref<1x8x64xbf16, #tpu.memory_space<vmem>>, %arg4: memref<1x8x64xbf16, #tpu.memory_space<vmem>>, %arg5: memref<1x8x64xbf16, #tpu.memory_space<vmem>>, %arg6: memref<64x32xbf16, #tpu.memory_space<vmem>>, %arg7: memref<1x32xf32, #tpu.memory_space<vmem>>, %arg8: memref<1x8x32xf32, #tpu.memory_space<vmem>>, %arg9: memref<8x4xf32, #tpu.memory_space<vmem>>, %arg10: memref<8x4xf32, #tpu.memory_space<vmem>>, %arg11: memref<8x64xf32, #tpu.memory_space<vmem>>) attributes {dimension_semantics = [#tpu.dimension_semantics<parallel>, #tpu.dimension_semantics<parallel>, #tpu.dimension_semantics<arbitrary>], iteration_bounds = array<i64: 2, 1, 1>, scalar_prefetch = 0 : i64, scratch_operands = 3 : i64, tpu.core_type = #tpu.core_type<tc>, window_params = [{transform_indices = @transform_0, window_bounds = array<i64: 1, 8, 64>}, {transform_indices = @transform_1, window_bounds = array<i64: 1, 8, 64>}, {transform_indices = @transform_2, window_bounds = array<i64: 1, 8, 64>}, {pipeline_mode = #tpu.pipeline_mode<synchronous>, transform_indices = @transform_3, window_bounds = array<i64: 64, 32>}, {pipeline_mode = #tpu.pipeline_mode<synchronous>, transform_indices = @transform_4, window_bounds = array<i64: 1, 32>}, {transform_indices = @transform_5, window_bounds = array<i64: 1, 8, 32>}]} {
    %c0_i32 = arith.constant 0 : i32
    %0 = arith.cmpi eq, %arg2, %c0_i32 : i32
    %1 = arith.extui %0 : i1 to i32
    %c0_i32_0 = arith.constant 0 : i32
    %2 = arith.cmpi ne, %1, %c0_i32_0 : i32
    scf.if %2 {
      %cst_68 = arith.constant 0xFF800000 : f32
      %120 = vector.broadcast %cst_68 : f32 to vector<8x4xf32>
      %c0_69 = arith.constant 0 : index
      %c0_70 = arith.constant 0 : index
      %121 = vector.load %arg9[%c0_69, %c0_70] : memref<8x4xf32, #tpu.memory_space<vmem>>, vector<8x4xf32>
      tpu.vector_store %arg9[%c0_69, %c0_70], %120 {strides = array<i32>} : memref<8x4xf32, #tpu.memory_space<vmem>>, vector<8x4xf32>,
      %cst_71 = arith.constant 0.000000e+00 : f32
      %122 = vector.broadcast %cst_71 : f32 to vector<8x4xf32>
      %c0_72 = arith.constant 0 : index
      %c0_73 = arith.constant 0 : index
      %123 = vector.load %arg10[%c0_72, %c0_73] : memref<8x4xf32, #tpu.memory_space<vmem>>, vector<8x4xf32>
      tpu.vector_store %arg10[%c0_72, %c0_73], %122 {strides = array<i32>} : memref<8x4xf32, #tpu.memory_space<vmem>>, vector<8x4xf32>,
      %cst_74 = arith.constant 0.000000e+00 : f32
      %124 = vector.broadcast %cst_74 : f32 to vector<8x64xf32>
      %c0_75 = arith.constant 0 : index
      %c0_76 = arith.constant 0 : index
      %125 = vector.load %arg11[%c0_75, %c0_76] : memref<8x64xf32, #tpu.memory_space<vmem>>, vector<8x64xf32>
      tpu.vector_store %arg11[%c0_75, %c0_76], %124 {strides = array<i32>} : memref<8x64xf32, #tpu.memory_space<vmem>>, vector<8x64xf32>,
    } else {
    }
    %c0 = arith.constant 0 : index
    %c0_1 = arith.constant 0 : index
    %c0_2 = arith.constant 0 : index
    %3 = vector.load %arg3[%c0, %c0_1, %c0_2] : memref<1x8x64xbf16, #tpu.memory_space<vmem>>, vector<1x8x64xbf16>
    %4 = vector.shape_cast %3 : vector<1x8x64xbf16> to vector<8x64xbf16>
    %c0_3 = arith.constant 0 : index
    %c0_4 = arith.constant 0 : index
    %c0_5 = arith.constant 0 : index
    %5 = vector.load %arg4[%c0_3, %c0_4, %c0_5] : memref<1x8x64xbf16, #tpu.memory_space<vmem>>, vector<1x8x64xbf16>
    %6 = vector.shape_cast %5 : vector<1x8x64xbf16> to vector<8x64xbf16>
    %c0_6 = arith.constant 0 : index
    %c0_7 = arith.constant 0 : index
    %c0_8 = arith.constant 0 : index
    %7 = vector.load %arg5[%c0_6, %c0_7, %c0_8] : memref<1x8x64xbf16, #tpu.memory_space<vmem>>, vector<1x8x64xbf16>
    %8 = vector.shape_cast %7 : vector<1x8x64xbf16> to vector<8x64xbf16>
    %9 = vector.extract_strided_slice %4 {offsets = [0, 0], sizes = [8, 16], strides = [1, 1]} : vector<8x64xbf16> to vector<8x16xbf16>
    %10 = vector.extract_strided_slice %6 {offsets = [0, 0], sizes = [8, 16], strides = [1, 1]} : vector<8x64xbf16> to vector<8x16xbf16>
    %cst = arith.constant dense<0.000000e+00> : vector<8x8xf32>
    %11 = tpu.matmul %9, %10, %cst {dimension_numbers = #tpu.dot_dimension_numbers<[1], [1], [0], [0], [0, 0, 1, 0], [], []>} : vector<8x16xbf16>, vector<8x16xbf16>, vector<8x8xf32> -> vector<8x8xf32>
    %c0_9 = arith.constant 0 : index
    %c0_10 = arith.constant 0 : index
    %12 = vector.load %arg9[%c0_9, %c0_10] : memref<8x4xf32, #tpu.memory_space<vmem>>, vector<8x1xf32>
    %cst_11 = arith.constant dense<0xFF800000> : vector<8xf32>
    %13 = vector.multi_reduction <maximumf>, %11, %cst_11 [1] : vector<8x8xf32> to vector<8xf32>
    %14 = vector.shape_cast %13 : vector<8xf32> to vector<8x1xf32>
    %15 = arith.maximumf %12, %14 : vector<8x1xf32>
    %16 = arith.subf %12, %15 : vector<8x1xf32>
    %17 = math.exp %16 : vector<8x1xf32>
    %18 = vector.broadcast %15 : vector<8x1xf32> to vector<8x8xf32>
    %19 = arith.subf %11, %18 : vector<8x8xf32>
    %20 = math.exp %19 : vector<8x8xf32>
    %c0_12 = arith.constant 0 : index
    %c0_13 = arith.constant 0 : index
    %21 = vector.load %arg10[%c0_12, %c0_13] : memref<8x4xf32, #tpu.memory_space<vmem>>, vector<8x1xf32>
    %22 = arith.mulf %17, %21 : vector<8x1xf32>
    %cst_14 = arith.constant dense<0.000000e+00> : vector<8xf32>
    %23 = vector.multi_reduction <add>, %20, %cst_14 [1] : vector<8x8xf32> to vector<8xf32>
    %24 = vector.shape_cast %23 : vector<8xf32> to vector<8x1xf32>
    %25 = arith.addf %22, %24 : vector<8x1xf32>
    %c0_15 = arith.constant 0 : index
    %c0_16 = arith.constant 0 : index
    %26 = vector.load %arg10[%c0_15, %c0_16] : memref<8x4xf32, #tpu.memory_space<vmem>>, vector<8x1xf32>
    tpu.vector_store %arg10[%c0_15, %c0_16], %25 {strides = array<i32>} : memref<8x4xf32, #tpu.memory_space<vmem>>, vector<8x1xf32>,
    %c0_17 = arith.constant 0 : index
    %c0_18 = arith.constant 0 : index
    %27 = vector.load %arg11[%c0_17, %c0_18] : memref<8x64xf32, #tpu.memory_space<vmem>>, vector<8x16xf32>
    %28 = vector.broadcast %17 : vector<8x1xf32> to vector<8x16xf32>
    %29 = arith.mulf %28, %27 : vector<8x16xf32>
    %30 = arith.truncf %20 : vector<8x8xf32> to vector<8x8xbf16>
    %31 = vector.extract_strided_slice %8 {offsets = [0, 0], sizes = [8, 16], strides = [1, 1]} : vector<8x64xbf16> to vector<8x16xbf16>
    %cst_19 = arith.constant dense<0.000000e+00> : vector<8x16xf32>
    %32 = tpu.matmul %30, %31, %cst_19 {dimension_numbers = #tpu.dot_dimension_numbers<[1], [0], [0], [1], [0, 0, 1, 1], [], []>} : vector<8x8xbf16>, vector<8x16xbf16>, vector<8x16xf32> -> vector<8x16xf32>
    %33 = arith.addf %29, %32 : vector<8x16xf32>
    %c0_20 = arith.constant 0 : index
    %c0_21 = arith.constant 0 : index
    %34 = vector.load %arg11[%c0_20, %c0_21] : memref<8x64xf32, #tpu.memory_space<vmem>>, vector<8x16xf32>
    tpu.vector_store %arg11[%c0_20, %c0_21], %33 {strides = array<i32>} : memref<8x64xf32, #tpu.memory_space<vmem>>, vector<8x16xf32>,
    %c0_22 = arith.constant 0 : index
    %c0_23 = arith.constant 0 : index
    %35 = vector.load %arg9[%c0_22, %c0_23] : memref<8x4xf32, #tpu.memory_space<vmem>>, vector<8x1xf32>
    tpu.vector_store %arg9[%c0_22, %c0_23], %15 {strides = array<i32>} : memref<8x4xf32, #tpu.memory_space<vmem>>, vector<8x1xf32>,
    %36 = vector.extract_strided_slice %4 {offsets = [0, 16], sizes = [8, 16], strides = [1, 1]} : vector<8x64xbf16> to vector<8x16xbf16>
    %37 = vector.extract_strided_slice %6 {offsets = [0, 16], sizes = [8, 16], strides = [1, 1]} : vector<8x64xbf16> to vector<8x16xbf16>
    %cst_24 = arith.constant dense<0.000000e+00> : vector<8x8xf32>
    %38 = tpu.matmul %36, %37, %cst_24 {dimension_numbers = #tpu.dot_dimension_numbers<[1], [1], [0], [0], [0, 0, 1, 0], [], []>} : vector<8x16xbf16>, vector<8x16xbf16>, vector<8x8xf32> -> vector<8x8xf32>
    %c0_25 = arith.constant 0 : index
    %c1 = arith.constant 1 : index
    %39 = vector.load %arg9[%c0_25, %c1] : memref<8x4xf32, #tpu.memory_space<vmem>>, vector<8x1xf32>
    %cst_26 = arith.constant dense<0xFF800000> : vector<8xf32>
    %40 = vector.multi_reduction <maximumf>, %38, %cst_26 [1] : vector<8x8xf32> to vector<8xf32>
    %41 = vector.shape_cast %40 : vector<8xf32> to vector<8x1xf32>
    %42 = arith.maximumf %39, %41 : vector<8x1xf32>
    %43 = arith.subf %39, %42 : vector<8x1xf32>
    %44 = math.exp %43 : vector<8x1xf32>
    %45 = vector.broadcast %42 : vector<8x1xf32> to vector<8x8xf32>
    %46 = arith.subf %38, %45 : vector<8x8xf32>
    %47 = math.exp %46 : vector<8x8xf32>
    %c0_27 = arith.constant 0 : index
    %c1_28 = arith.constant 1 : index
    %48 = vector.load %arg10[%c0_27, %c1_28] : memref<8x4xf32, #tpu.memory_space<vmem>>, vector<8x1xf32>
    %49 = arith.mulf %44, %48 : vector<8x1xf32>
    %cst_29 = arith.constant dense<0.000000e+00> : vector<8xf32>
    %50 = vector.multi_reduction <add>, %47, %cst_29 [1] : vector<8x8xf32> to vector<8xf32>
    %51 = vector.shape_cast %50 : vector<8xf32> to vector<8x1xf32>
    %52 = arith.addf %49, %51 : vector<8x1xf32>
    %c0_30 = arith.constant 0 : index
    %c1_31 = arith.constant 1 : index
    %53 = vector.load %arg10[%c0_30, %c1_31] : memref<8x4xf32, #tpu.memory_space<vmem>>, vector<8x1xf32>
    tpu.vector_store %arg10[%c0_30, %c1_31], %52 {strides = array<i32>} : memref<8x4xf32, #tpu.memory_space<vmem>>, vector<8x1xf32>,
    %c0_32 = arith.constant 0 : index
    %c16 = arith.constant 16 : index
    %54 = vector.load %arg11[%c0_32, %c16] : memref<8x64xf32, #tpu.memory_space<vmem>>, vector<8x16xf32>
    %55 = vector.broadcast %44 : vector<8x1xf32> to vector<8x16xf32>
    %56 = arith.mulf %55, %54 : vector<8x16xf32>
    %57 = arith.truncf %47 : vector<8x8xf32> to vector<8x8xbf16>
    %58 = vector.extract_strided_slice %8 {offsets = [0, 16], sizes = [8, 16], strides = [1, 1]} : vector<8x64xbf16> to vector<8x16xbf16>
    %cst_33 = arith.constant dense<0.000000e+00> : vector<8x16xf32>
    %59 = tpu.matmul %57, %58, %cst_33 {dimension_numbers = #tpu.dot_dimension_numbers<[1], [0], [0], [1], [0, 0, 1, 1], [], []>} : vector<8x8xbf16>, vector<8x16xbf16>, vector<8x16xf32> -> vector<8x16xf32>
    %60 = arith.addf %56, %59 : vector<8x16xf32>
    %c0_34 = arith.constant 0 : index
    %c16_35 = arith.constant 16 : index
    %61 = vector.load %arg11[%c0_34, %c16_35] : memref<8x64xf32, #tpu.memory_space<vmem>>, vector<8x16xf32>
    tpu.vector_store %arg11[%c0_34, %c16_35], %60 {strides = array<i32>} : memref<8x64xf32, #tpu.memory_space<vmem>>, vector<8x16xf32>,
    %c0_36 = arith.constant 0 : index
    %c1_37 = arith.constant 1 : index
    %62 = vector.load %arg9[%c0_36, %c1_37] : memref<8x4xf32, #tpu.memory_space<vmem>>, vector<8x1xf32>
    tpu.vector_store %arg9[%c0_36, %c1_37], %42 {strides = array<i32>} : memref<8x4xf32, #tpu.memory_space<vmem>>, vector<8x1xf32>,
    %63 = vector.extract_strided_slice %4 {offsets = [0, 32], sizes = [8, 16], strides = [1, 1]} : vector<8x64xbf16> to vector<8x16xbf16>
    %64 = vector.extract_strided_slice %6 {offsets = [0, 32], sizes = [8, 16], strides = [1, 1]} : vector<8x64xbf16> to vector<8x16xbf16>
    %cst_38 = arith.constant dense<0.000000e+00> : vector<8x8xf32>
    %65 = tpu.matmul %63, %64, %cst_38 {dimension_numbers = #tpu.dot_dimension_numbers<[1], [1], [0], [0], [0, 0, 1, 0], [], []>} : vector<8x16xbf16>, vector<8x16xbf16>, vector<8x8xf32> -> vector<8x8xf32>
    %c0_39 = arith.constant 0 : index
    %c2 = arith.constant 2 : index
    %66 = vector.load %arg9[%c0_39, %c2] : memref<8x4xf32, #tpu.memory_space<vmem>>, vector<8x1xf32>
    %cst_40 = arith.constant dense<0xFF800000> : vector<8xf32>
    %67 = vector.multi_reduction <maximumf>, %65, %cst_40 [1] : vector<8x8xf32> to vector<8xf32>
    %68 = vector.shape_cast %67 : vector<8xf32> to vector<8x1xf32>
    %69 = arith.maximumf %66, %68 : vector<8x1xf32>
    %70 = arith.subf %66, %69 : vector<8x1xf32>
    %71 = math.exp %70 : vector<8x1xf32>
    %72 = vector.broadcast %69 : vector<8x1xf32> to vector<8x8xf32>
    %73 = arith.subf %65, %72 : vector<8x8xf32>
    %74 = math.exp %73 : vector<8x8xf32>
    %c0_41 = arith.constant 0 : index
    %c2_42 = arith.constant 2 : index
    %75 = vector.load %arg10[%c0_41, %c2_42] : memref<8x4xf32, #tpu.memory_space<vmem>>, vector<8x1xf32>
    %76 = arith.mulf %71, %75 : vector<8x1xf32>
    %cst_43 = arith.constant dense<0.000000e+00> : vector<8xf32>
    %77 = vector.multi_reduction <add>, %74, %cst_43 [1] : vector<8x8xf32> to vector<8xf32>
    %78 = vector.shape_cast %77 : vector<8xf32> to vector<8x1xf32>
    %79 = arith.addf %76, %78 : vector<8x1xf32>
    %c0_44 = arith.constant 0 : index
    %c2_45 = arith.constant 2 : index
    %80 = vector.load %arg10[%c0_44, %c2_45] : memref<8x4xf32, #tpu.memory_space<vmem>>, vector<8x1xf32>
    tpu.vector_store %arg10[%c0_44, %c2_45], %79 {strides = array<i32>} : memref<8x4xf32, #tpu.memory_space<vmem>>, vector<8x1xf32>,
    %c0_46 = arith.constant 0 : index
    %c32 = arith.constant 32 : index
    %81 = vector.load %arg11[%c0_46, %c32] : memref<8x64xf32, #tpu.memory_space<vmem>>, vector<8x16xf32>
    %82 = vector.broadcast %71 : vector<8x1xf32> to vector<8x16xf32>
    %83 = arith.mulf %82, %81 : vector<8x16xf32>
    %84 = arith.truncf %74 : vector<8x8xf32> to vector<8x8xbf16>
    %85 = vector.extract_strided_slice %8 {offsets = [0, 32], sizes = [8, 16], strides = [1, 1]} : vector<8x64xbf16> to vector<8x16xbf16>
    %cst_47 = arith.constant dense<0.000000e+00> : vector<8x16xf32>
    %86 = tpu.matmul %84, %85, %cst_47 {dimension_numbers = #tpu.dot_dimension_numbers<[1], [0], [0], [1], [0, 0, 1, 1], [], []>} : vector<8x8xbf16>, vector<8x16xbf16>, vector<8x16xf32> -> vector<8x16xf32>
    %87 = arith.addf %83, %86 : vector<8x16xf32>
    %c0_48 = arith.constant 0 : index
    %c32_49 = arith.constant 32 : index
    %88 = vector.load %arg11[%c0_48, %c32_49] : memref<8x64xf32, #tpu.memory_space<vmem>>, vector<8x16xf32>
    tpu.vector_store %arg11[%c0_48, %c32_49], %87 {strides = array<i32>} : memref<8x64xf32, #tpu.memory_space<vmem>>, vector<8x16xf32>,
    %c0_50 = arith.constant 0 : index
    %c2_51 = arith.constant 2 : index
    %89 = vector.load %arg9[%c0_50, %c2_51] : memref<8x4xf32, #tpu.memory_space<vmem>>, vector<8x1xf32>
    tpu.vector_store %arg9[%c0_50, %c2_51], %69 {strides = array<i32>} : memref<8x4xf32, #tpu.memory_space<vmem>>, vector<8x1xf32>,
    %90 = vector.extract_strided_slice %4 {offsets = [0, 48], sizes = [8, 16], strides = [1, 1]} : vector<8x64xbf16> to vector<8x16xbf16>
    %91 = vector.extract_strided_slice %6 {offsets = [0, 48], sizes = [8, 16], strides = [1, 1]} : vector<8x64xbf16> to vector<8x16xbf16>
    %cst_52 = arith.constant dense<0.000000e+00> : vector<8x8xf32>
    %92 = tpu.matmul %90, %91, %cst_52 {dimension_numbers = #tpu.dot_dimension_numbers<[1], [1], [0], [0], [0, 0, 1, 0], [], []>} : vector<8x16xbf16>, vector<8x16xbf16>, vector<8x8xf32> -> vector<8x8xf32>
    %c0_53 = arith.constant 0 : index
    %c3 = arith.constant 3 : index
    %93 = vector.load %arg9[%c0_53, %c3] : memref<8x4xf32, #tpu.memory_space<vmem>>, vector<8x1xf32>
    %cst_54 = arith.constant dense<0xFF800000> : vector<8xf32>
    %94 = vector.multi_reduction <maximumf>, %92, %cst_54 [1] : vector<8x8xf32> to vector<8xf32>
    %95 = vector.shape_cast %94 : vector<8xf32> to vector<8x1xf32>
    %96 = arith.maximumf %93, %95 : vector<8x1xf32>
    %97 = arith.subf %93, %96 : vector<8x1xf32>
    %98 = math.exp %97 : vector<8x1xf32>
    %99 = vector.broadcast %96 : vector<8x1xf32> to vector<8x8xf32>
    %100 = arith.subf %92, %99 : vector<8x8xf32>
    %101 = math.exp %100 : vector<8x8xf32>
    %c0_55 = arith.constant 0 : index
    %c3_56 = arith.constant 3 : index
    %102 = vector.load %arg10[%c0_55, %c3_56] : memref<8x4xf32, #tpu.memory_space<vmem>>, vector<8x1xf32>
    %103 = arith.mulf %98, %102 : vector<8x1xf32>
    %cst_57 = arith.constant dense<0.000000e+00> : vector<8xf32>
    %104 = vector.multi_reduction <add>, %101, %cst_57 [1] : vector<8x8xf32> to vector<8xf32>
    %105 = vector.shape_cast %104 : vector<8xf32> to vector<8x1xf32>
    %106 = arith.addf %103, %105 : vector<8x1xf32>
    %c0_58 = arith.constant 0 : index
    %c3_59 = arith.constant 3 : index
    %107 = vector.load %arg10[%c0_58, %c3_59] : memref<8x4xf32, #tpu.memory_space<vmem>>, vector<8x1xf32>
    tpu.vector_store %arg10[%c0_58, %c3_59], %106 {strides = array<i32>} : memref<8x4xf32, #tpu.memory_space<vmem>>, vector<8x1xf32>,
    %c0_60 = arith.constant 0 : index
    %c48 = arith.constant 48 : index
    %108 = vector.load %arg11[%c0_60, %c48] : memref<8x64xf32, #tpu.memory_space<vmem>>, vector<8x16xf32>
    %109 = vector.broadcast %98 : vector<8x1xf32> to vector<8x16xf32>
    %110 = arith.mulf %109, %108 : vector<8x16xf32>
    %111 = arith.truncf %101 : vector<8x8xf32> to vector<8x8xbf16>
    %112 = vector.extract_strided_slice %8 {offsets = [0, 48], sizes = [8, 16], strides = [1, 1]} : vector<8x64xbf16> to vector<8x16xbf16>
    %cst_61 = arith.constant dense<0.000000e+00> : vector<8x16xf32>
    %113 = tpu.matmul %111, %112, %cst_61 {dimension_numbers = #tpu.dot_dimension_numbers<[1], [0], [0], [1], [0, 0, 1, 1], [], []>} : vector<8x8xbf16>, vector<8x16xbf16>, vector<8x16xf32> -> vector<8x16xf32>
    %114 = arith.addf %110, %113 : vector<8x16xf32>
    %c0_62 = arith.constant 0 : index
    %c48_63 = arith.constant 48 : index
    %115 = vector.load %arg11[%c0_62, %c48_63] : memref<8x64xf32, #tpu.memory_space<vmem>>, vector<8x16xf32>
    tpu.vector_store %arg11[%c0_62, %c48_63], %114 {strides = array<i32>} : memref<8x64xf32, #tpu.memory_space<vmem>>, vector<8x16xf32>,
    %c0_64 = arith.constant 0 : index
    %c3_65 = arith.constant 3 : index
    %116 = vector.load %arg9[%c0_64, %c3_65] : memref<8x4xf32, #tpu.memory_space<vmem>>, vector<8x1xf32>
    tpu.vector_store %arg9[%c0_64, %c3_65], %96 {strides = array<i32>} : memref<8x4xf32, #tpu.memory_space<vmem>>, vector<8x1xf32>,
    %c0_i32_66 = arith.constant 0 : i32
    %117 = arith.cmpi eq, %arg2, %c0_i32_66 : i32
    %118 = arith.extui %117 : i1 to i32
    %c0_i32_67 = arith.constant 0 : i32
    %119 = arith.cmpi ne, %118, %c0_i32_67 : i32
    scf.if %119 {
      %c0_68 = arith.constant 0 : index
      %c0_69 = arith.constant 0 : index
      %120 = vector.load %arg11[%c0_68, %c0_69] : memref<8x64xf32, #tpu.memory_space<vmem>>, vector<8x16xf32>
      %c0_70 = arith.constant 0 : index
      %c0_71 = arith.constant 0 : index
      %121 = vector.load %arg10[%c0_70, %c0_71] : memref<8x4xf32, #tpu.memory_space<vmem>>, vector<8x1xf32>
      %122 = vector.broadcast %121 : vector<8x1xf32> to vector<8x16xf32>
      %123 = arith.divf %120, %122 : vector<8x16xf32>
      %c0_72 = arith.constant 0 : index
      %c0_73 = arith.constant 0 : index
      %124 = vector.load %arg11[%c0_72, %c0_73] : memref<8x64xf32, #tpu.memory_space<vmem>>, vector<8x16xf32>
      tpu.vector_store %arg11[%c0_72, %c0_73], %123 {strides = array<i32>} : memref<8x64xf32, #tpu.memory_space<vmem>>, vector<8x16xf32>,
      %c0_74 = arith.constant 0 : index
      %c16_75 = arith.constant 16 : index
      %125 = vector.load %arg11[%c0_74, %c16_75] : memref<8x64xf32, #tpu.memory_space<vmem>>, vector<8x16xf32>
      %c0_76 = arith.constant 0 : index
      %c1_77 = arith.constant 1 : index
      %126 = vector.load %arg10[%c0_76, %c1_77] : memref<8x4xf32, #tpu.memory_space<vmem>>, vector<8x1xf32>
      %127 = vector.broadcast %126 : vector<8x1xf32> to vector<8x16xf32>
      %128 = arith.divf %125, %127 : vector<8x16xf32>
      %c0_78 = arith.constant 0 : index
      %c16_79 = arith.constant 16 : index
      %129 = vector.load %arg11[%c0_78, %c16_79] : memref<8x64xf32, #tpu.memory_space<vmem>>, vector<8x16xf32>
      tpu.vector_store %arg11[%c0_78, %c16_79], %128 {strides = array<i32>} : memref<8x64xf32, #tpu.memory_space<vmem>>, vector<8x16xf32>,
      %c0_80 = arith.constant 0 : index
      %c32_81 = arith.constant 32 : index
      %130 = vector.load %arg11[%c0_80, %c32_81] : memref<8x64xf32, #tpu.memory_space<vmem>>, vector<8x16xf32>
      %c0_82 = arith.constant 0 : index
      %c2_83 = arith.constant 2 : index
      %131 = vector.load %arg10[%c0_82, %c2_83] : memref<8x4xf32, #tpu.memory_space<vmem>>, vector<8x1xf32>
      %132 = vector.broadcast %131 : vector<8x1xf32> to vector<8x16xf32>
      %133 = arith.divf %130, %132 : vector<8x16xf32>
      %c0_84 = arith.constant 0 : index
      %c32_85 = arith.constant 32 : index
      %134 = vector.load %arg11[%c0_84, %c32_85] : memref<8x64xf32, #tpu.memory_space<vmem>>, vector<8x16xf32>
      tpu.vector_store %arg11[%c0_84, %c32_85], %133 {strides = array<i32>} : memref<8x64xf32, #tpu.memory_space<vmem>>, vector<8x16xf32>,
      %c0_86 = arith.constant 0 : index
      %c48_87 = arith.constant 48 : index
      %135 = vector.load %arg11[%c0_86, %c48_87] : memref<8x64xf32, #tpu.memory_space<vmem>>, vector<8x16xf32>
      %c0_88 = arith.constant 0 : index
      %c3_89 = arith.constant 3 : index
      %136 = vector.load %arg10[%c0_88, %c3_89] : memref<8x4xf32, #tpu.memory_space<vmem>>, vector<8x1xf32>
      %137 = vector.broadcast %136 : vector<8x1xf32> to vector<8x16xf32>
      %138 = arith.divf %135, %137 : vector<8x16xf32>
      %c0_90 = arith.constant 0 : index
      %c48_91 = arith.constant 48 : index
      %139 = vector.load %arg11[%c0_90, %c48_91] : memref<8x64xf32, #tpu.memory_space<vmem>>, vector<8x16xf32>
      tpu.vector_store %arg11[%c0_90, %c48_91], %138 {strides = array<i32>} : memref<8x64xf32, #tpu.memory_space<vmem>>, vector<8x16xf32>,
      %c0_92 = arith.constant 0 : index
      %c0_93 = arith.constant 0 : index
      %140 = vector.load %arg11[%c0_92, %c0_93] : memref<8x64xf32, #tpu.memory_space<vmem>>, vector<8x64xf32>
      %141 = arith.truncf %140 : vector<8x64xf32> to vector<8x64xbf16>
      %c0_94 = arith.constant 0 : index
      %c0_95 = arith.constant 0 : index
      %142 = vector.load %arg6[%c0_94, %c0_95] : memref<64x32xbf16, #tpu.memory_space<vmem>>, vector<64x32xbf16>
      %cst_96 = arith.constant dense<0.000000e+00> : vector<8x32xf32>
      %143 = tpu.matmul %141, %142, %cst_96 {dimension_numbers = #tpu.dot_dimension_numbers<[1], [0], [0], [1], [0, 0, 1, 1], [], []>} : vector<8x64xbf16>, vector<64x32xbf16>, vector<8x32xf32> -> vector<8x32xf32>
      %c0_97 = arith.constant 0 : index
      %c0_98 = arith.constant 0 : index
      %144 = vector.load %arg7[%c0_97, %c0_98] : memref<1x32xf32, #tpu.memory_space<vmem>>, vector<1x32xf32>
      %145 = vector.shape_cast %144 : vector<1x32xf32> to vector<32xf32>
      %146 = vector.shape_cast %145 : vector<32xf32> to vector<1x32xf32>
      %147 = vector.broadcast %146 : vector<1x32xf32> to vector<8x32xf32>
      %148 = arith.addf %143, %147 : vector<8x32xf32>
      %c0_99 = arith.constant 0 : index
      %c0_100 = arith.constant 0 : index
      %c0_101 = arith.constant 0 : index
      %149 = vector.load %arg8[%c0_99, %c0_100, %c0_101] : memref<1x8x32xf32, #tpu.memory_space<vmem>>, vector<1x8x32xf32>
      %150 = vector.shape_cast %149 : vector<1x8x32xf32> to vector<8x32xf32>
      %151 = vector.shape_cast %148 : vector<8x32xf32> to vector<1x8x32xf32>
      tpu.vector_store %arg8[%c0_99, %c0_100, %c0_101], %151 {strides = array<i32>} : memref<1x8x32xf32, #tpu.memory_space<vmem>>, vector<1x8x32xf32>,
    } else {
    }
    return
  }
  func.func @transform_0(%arg0: i32, %arg1: i32, %arg2: i32) -> (i32, i32, i32) {
    %c0_i32 = arith.constant 0 : i32
    %c0_i32_0 = arith.constant 0 : i32
    return %arg0, %arg1, %c0_i32 : i32, i32, i32
  }
  func.func @transform_1(%arg0: i32, %arg1: i32, %arg2: i32) -> (i32, i32, i32) {
    %c0_i32 = arith.constant 0 : i32
    %c0_i32_0 = arith.constant 0 : i32
    return %arg0, %arg2, %c0_i32 : i32, i32, i32
  }
  func.func @transform_2(%arg0: i32, %arg1: i32, %arg2: i32) -> (i32, i32, i32) {
    %c0_i32 = arith.constant 0 : i32
    %c0_i32_0 = arith.constant 0 : i32
    return %arg0, %arg2, %c0_i32 : i32, i32, i32
  }
  func.func @transform_3(%arg0: i32, %arg1: i32, %arg2: i32) -> (i32, i32) {
    %c0_i32 = arith.constant 0 : i32
    %c0_i32_0 = arith.constant 0 : i32
    %c0_i32_1 = arith.constant 0 : i32
    return %c0_i32, %c0_i32_0 : i32, i32
  }
  func.func @transform_4(%arg0: i32, %arg1: i32, %arg2: i32) -> (i32, i32) {
    %c0_i32 = arith.constant 0 : i32
    %c0_i32_0 = arith.constant 0 : i32
    %c0_i32_1 = arith.constant 0 : i32
    return %c0_i32, %c0_i32_0 : i32, i32
  }
  func.func @transform_5(%arg0: i32, %arg1: i32, %arg2: i32) -> (i32, i32, i32) {
    %c0_i32 = arith.constant 0 : i32
    %c0_i32_0 = arith.constant 0 : i32
    return %arg0, %arg1, %c0_i32 : i32, i32, i32
  }
}

</mosaic_0001>

<llo_original>
// kernel: attention_pallas.2
$region0: #{attention_pallas.2}
  #allocation0 [shape = 'u32[]', space=smem, size = 0x4, offset = 0x4, fixed_abs, tag = 'smem constant byte address 0x4 - core index']
  #allocation1 [shape = 'u32[144,128]{1,0:T(1,128)}', space=vmem, size = 0x12000, scoped, tag = 'internal scratch']
  %s0 = inlined_call_operand.vmem [shape: f32[2,8,32], index: 0, kind: input, shape index: {}]
  %s1 = inlined_call_operand.vmem [shape: f32[1,32], index: 1, kind: input, shape index: {}]
  %s2 = inlined_call_operand.vmem [shape: f32[1,32], index: 2, kind: input, shape index: {}]
  %s3 = inlined_call_operand.vmem [shape: bf16[32,192], index: 3, kind: input, shape index: {}]
  %s4 = inlined_call_operand.vmem [shape: bf16[2,8,64], index: 4, kind: output, shape index: {0}]
  %s5 = inlined_call_operand.vmem [shape: bf16[2,8,64], index: 5, kind: output, shape index: {1}]
  %s6 = inlined_call_operand.vmem [shape: bf16[2,8,64], index: 6, kind: output, shape index: {2}]
  %7 = xla_tuple %s4, %s5, %s6
  %s8 = sld [smem:[#allocation0]]
  $region65: #{attention_pallas.2} parent=0
    _
  %s10 = ssub.s32 1, %s8
  %s11 = scalar_select 0, %s10, %s8
  loop: start=0, step=1, limit=4
  $region2: #{attention_pallas.2} parent=0 // loop_pre_header
    _
  $region3: #{attention_pallas.2} parent=0 // loop_header
    %s13 = sphi 0, %s17
    %p14 = scmp.ge.s32.totalorder %s13, 4
    %s20 = sphi 0, %s32
    %s21 = sphi 0, %s28
    %s22 = sphi 0, %s20
    %s23 = sphi 0, %s21
    %s24 = sphi 0, %s22
    %s25 = sphi 0, %s23
    %s37 = sphi 0, %s39
    %s40 = sphi 0, %s37
    %s41 = sphi 0, %s40
    %s57 = sphi 0, %s41
    %s61 = sphi 0, %s61
    %s63 = sphi 0, %s61
    %s64 = sphi 0, %s63
    %s78 = sphi 0, %s64
    %s82 = sphi 0, %s82
    %s84 = sphi 0, %s82
    %s85 = sphi 0, %s84
    %s99 = sphi 0, %s85
    %s103 = sphi 0, %s103
    %s105 = sphi 0, %s103
    %s106 = sphi 0, %s105
    %s120 = sphi 0, %s106
    %s128 = sphi 0, %s130
    %s131 = sphi 0, %s128
    %s132 = sphi 0, %s131
    %s148 = sphi 0, %s132
    %s156 = sphi 0, %s158
    %s159 = sphi 0, %s156
    %s160 = sphi 0, %s159
    %s176 = sphi 0, %s160
    %s184 = sphi 0, %s186
    %s187 = sphi 0, %s184
    %s188 = sphi 0, %s187
    %s204 = sphi 0, %s188
  $region4: #{attention_pallas.2} parent=0 // loop_header_branch
    %16 = sbr.rel (%p14) target = $region8
  $region5: #{attention_pallas.2} parent=0 // loop_body
    %s18 = ssub.s32 %s13, 1
    %s19 = ssub.s32 %s13, 2
    %s26 = sadd.s32 1, %s21
    %p27 = scmp.ge.s32.totalorder %s26, 1
    %s28 = scalar_select %p27, 0, %s26
    %s29 = sadd.s32 1, %s20
    %s30 = scalar_select %p27, %s29, %s20
    %p31 = scmp.ge.s32.totalorder %s30, 2
    %s32 = scalar_select %p31, 0, %s30
    %s33 = ssub.s32 %s20, %s32
    %s34 = ssub.s32 %s21, %s28
    %s35 = sor.u32 %s33, %s34
    %p36 = scmp.eq.s32.totalorder %s35, 0
    %s38 = sadd.s32 %s37, 1
    %s39 = scalar_select %p36, %s37, %s38
    %p42 = pneg %p36
    %p43 = scmp.eq.s32.totalorder %s13, 1
    %p44 = por %p42, %p43
    %p45 = scmp.ne.s32.totalorder %s37, %s40
    %p46 = scmp.eq.s32.totalorder %s13, 0
    %p47 = por %p45, %p46
    %p48 = scmp.ne.s32.totalorder %s37, %s40
    %p49 = scmp.eq.s32.totalorder %s18, 1
    %p50 = por %p48, %p49
    %p51 = scmp.ne.s32.totalorder %s40, %s41
    %p52 = scmp.eq.s32.totalorder %s18, 0
    %p53 = por %p51, %p52
    %p54 = scmp.ne.s32.totalorder %s40, %s41
    %p55 = scmp.eq.s32.totalorder %s19, 1
    %p56 = por %p54, %p55
    %p58 = scmp.ne.s32.totalorder %s41, %s57
    %p59 = scmp.eq.s32.totalorder %s19, 0
    %p60 = por %p58, %p59
    %s62 = sadd.s32 %s61, 1
    %p65 = scmp.eq.s32.totalorder %s13, 1
    %p66 = scmp.ne.s32.totalorder %s61, %s63
    %p67 = scmp.eq.s32.totalorder %s13, 0
    %p68 = por %p66, %p67
    %p69 = scmp.ne.s32.totalorder %s61, %s63
    %p70 = scmp.eq.s32.totalorder %s18, 1
    %p71 = por %p69, %p70
    %p72 = scmp.ne.s32.totalorder %s63, %s64
    %p73 = scmp.eq.s32.totalorder %s18, 0
    %p74 = por %p72, %p73
    %p75 = scmp.ne.s32.totalorder %s63, %s64
    %p76 = scmp.eq.s32.totalorder %s19, 1
    %p77 = por %p75, %p76
    %p79 = scmp.ne.s32.totalorder %s64, %s78
    %p80 = scmp.eq.s32.totalorder %s19, 0
    %p81 = por %p79, %p80
    %s83 = sadd.s32 %s82, 1
    %p86 = scmp.eq.s32.totalorder %s13, 1
    %p87 = scmp.ne.s32.totalorder %s82, %s84
    %p88 = scmp.eq.s32.totalorder %s13, 0
    %p89 = por %p87, %p88
    %p90 = scmp.ne.s32.totalorder %s82, %s84
    %p91 = scmp.eq.s32.totalorder %s18, 1
    %p92 = por %p90, %p91
    %p93 = scmp.ne.s32.totalorder %s84, %s85
    %p94 = scmp.eq.s32.totalorder %s18, 0
    %p95 = por %p93, %p94
    %p96 = scmp.ne.s32.totalorder %s84, %s85
    %p97 = scmp.eq.s32.totalorder %s19, 1
    %p98 = por %p96, %p97
    %p100 = scmp.ne.s32.totalorder %s85, %s99
    %p101 = scmp.eq.s32.totalorder %s19, 0
    %p102 = por %p100, %p101
    %s104 = sadd.s32 %s103, 1
    %p107 = scmp.eq.s32.totalorder %s13, 1
    %p108 = scmp.ne.s32.totalorder %s103, %s105
    %p109 = scmp.eq.s32.totalorder %s13, 0
    %p110 = por %p108, %p109
    %p111 = scmp.ne.s32.totalorder %s103, %s105
    %p112 = scmp.eq.s32.totalorder %s18, 1
    %p113 = por %p111, %p112
    %p114 = scmp.ne.s32.totalorder %s105, %s106
    %p115 = scmp.eq.s32.totalorder %s18, 0
    %p116 = por %p114, %p115
    %p117 = scmp.ne.s32.totalorder %s105, %s106
    %p118 = scmp.eq.s32.totalorder %s19, 1
    %p119 = por %p117, %p118
    %p121 = scmp.ne.s32.totalorder %s106, %s120
    %p122 = scmp.eq.s32.totalorder %s19, 0
    %p123 = por %p121, %p122
    %s124 = ssub.s32 %s20, %s32
    %s125 = ssub.s32 %s21, %s28
    %s126 = sor.u32 %s124, %s125
    %p127 = scmp.eq.s32.totalorder %s126, 0
    %s129 = sadd.s32 %s128, 1
    %s130 = scalar_select %p127, %s128, %s129
    %p133 = pneg %p127
    %p134 = scmp.eq.s32.totalorder %s13, 1
    %p135 = por %p133, %p134
    %p136 = scmp.ne.s32.totalorder %s128, %s131
    %p137 = scmp.eq.s32.totalorder %s13, 0
    %p138 = por %p136, %p137
    %p139 = scmp.ne.s32.totalorder %s128, %s131
    %p140 = scmp.eq.s32.totalorder %s18, 1
    %p141 = por %p139, %p140
    %p142 = scmp.ne.s32.totalorder %s131, %s132
    %p143 = scmp.eq.s32.totalorder %s18, 0
    %p144 = por %p142, %p143
    %p145 = scmp.ne.s32.totalorder %s131, %s132
    %p146 = scmp.eq.s32.totalorder %s19, 1
    %p147 = por %p145, %p146
    %p149 = scmp.ne.s32.totalorder %s132, %s148
    %p150 = scmp.eq.s32.totalorder %s19, 0
    %p151 = por %p149, %p150
    %s152 = ssub.s32 %s20, %s32
    %s153 = ssub.s32 %s21, %s28
    %s154 = sor.u32 %s152, %s153
    %p155 = scmp.eq.s32.totalorder %s154, 0
    %s157 = sadd.s32 %s156, 1
    %s158 = scalar_select %p155, %s156, %s157
    %p161 = pneg %p155
    %p162 = scmp.eq.s32.totalorder %s13, 1
    %p163 = por %p161, %p162
    %p164 = scmp.ne.s32.totalorder %s156, %s159
    %p165 = scmp.eq.s32.totalorder %s13, 0
    %p166 = por %p164, %p165
    %p167 = scmp.ne.s32.totalorder %s156, %s159
    %p168 = scmp.eq.s32.totalorder %s18, 1
    %p169 = por %p167, %p168
    %p170 = scmp.ne.s32.totalorder %s159, %s160
    %p171 = scmp.eq.s32.totalorder %s18, 0
    %p172 = por %p170, %p171
    %p173 = scmp.ne.s32.totalorder %s159, %s160
    %p174 = scmp.eq.s32.totalorder %s19, 1
    %p175 = por %p173, %p174
    %p177 = scmp.ne.s32.totalorder %s160, %s176
    %p178 = scmp.eq.s32.totalorder %s19, 0
    %p179 = por %p177, %p178
    %s180 = ssub.s32 %s20, %s32
    %s181 = ssub.s32 %s21, %s28
    %s182 = sor.u32 %s180, %s181
    %p183 = scmp.eq.s32.totalorder %s182, 0
    %s185 = sadd.s32 %s184, 1
    %s186 = scalar_select %p183, %s184, %s185
    %p189 = pneg %p183
    %p190 = scmp.eq.s32.totalorder %s13, 1
    %p191 = por %p189, %p190
    %p192 = scmp.ne.s32.totalorder %s184, %s187
    %p193 = scmp.eq.s32.totalorder %s13, 0
    %p194 = por %p192, %p193
    %p195 = scmp.ne.s32.totalorder %s184, %s187
    %p196 = scmp.eq.s32.totalorder %s18, 1
    %p197 = por %p195, %p196
    %p198 = scmp.ne.s32.totalorder %s187, %s188
    %p199 = scmp.eq.s32.totalorder %s18, 0
    %p200 = por %p198, %p199
    %p201 = scmp.ne.s32.totalorder %s187, %s188
    %p202 = scmp.eq.s32.totalorder %s19, 1
    %p203 = por %p201, %p202
    %p205 = scmp.ne.s32.totalorder %s188, %s204
    %p206 = scmp.eq.s32.totalorder %s19, 0
    %p207 = por %p205, %p206
    %p208 = scmp.le.s32.totalorder 1, %s13
    %p209 = scmp.lt.s32.totalorder %s13, 3
    %p210 = pnand %p208, %p209
    %p211 = pneg %p210
    // Predicated region
    $region9: #{attention_pallas.2} parent=5 // pred_check
      _
    $region10: #{attention_pallas.2} parent=5 // pred_check_branch
      %213 = sbr.rel (%p210) target = $region12
    $region11: #{attention_pallas.2} parent=5 // pred_region
      %s214 = ssub.s32 %s13, 1
      // Predicated region
      $region13: #{attention_pallas.2} parent=11 // pred_check
        %p215 = pneg %p74
      $region14: #{attention_pallas.2} parent=11 // pred_check_branch
        %217 = sbr.rel (%p215) target = $region16
      $region15: #{attention_pallas.2} parent=11 // pred_region
        _
      $region16: #{attention_pallas.2} parent=11 // pred_fallthru
        _
      // Predicated region
      $region17: #{attention_pallas.2} parent=11 // pred_check
        %p218 = pneg %p95
      $region18: #{attention_pallas.2} parent=11 // pred_check_branch
        %220 = sbr.rel (%p218) target = $region20
      $region19: #{attention_pallas.2} parent=11 // pred_region
        _
      $region20: #{attention_pallas.2} parent=11 // pred_fallthru
        _
      // Predicated region
      $region21: #{attention_pallas.2} parent=11 // pred_check
        %p221 = pneg %p116
      $region22: #{attention_pallas.2} parent=11 // pred_check_branch
        %223 = sbr.rel (%p221) target = $region24
      $region23: #{attention_pallas.2} parent=11 // pred_region
        _
      $region24: #{attention_pallas.2} parent=11 // pred_fallthru
        _
    $region12: #{attention_pallas.2} parent=5 // pred_fallthru
      _
    %p224 = scmp.lt.s32.totalorder %s13, 2
    // Predicated region
    $region25: #{attention_pallas.2} parent=5 // pred_check
      %p225 = pneg %p224
    $region26: #{attention_pallas.2} parent=5 // pred_check_branch
      %227 = sbr.rel (%p225) target = $region28
    $region27: #{attention_pallas.2} parent=5 // pred_region
      // Predicated region
      $region29: #{attention_pallas.2} parent=27 // pred_check
        %p228 = pneg %p47
      $region30: #{attention_pallas.2} parent=27 // pred_check_branch
        %230 = sbr.rel (%p228) target = $region32
      $region31: #{attention_pallas.2} parent=27 // pred_region
        %p231 = scmp.lt.s32.totalorder %s20, 1
        %s232 = scalar_select %p231, %s20, 1
        %p233 = scmp.lt.s32.totalorder %s21, 0
        %s234 = scalar_select %p233, %s21, 0
        %s235 = sadd.s32 %s234, %s232
        %s236 = smul.addr %s235, 8
        %s237 = scalar_lea.vmem %s0, %s236
      $region32: #{attention_pallas.2} parent=27 // pred_fallthru
        _
    $region28: #{attention_pallas.2} parent=5 // pred_fallthru
      _
    %p238 = scmp.le.s32.totalorder 1, %s13
    %p239 = scmp.lt.s32.totalorder %s13, 3
    %p240 = pnand %p238, %p239
    %p241 = pneg %p240
    // Predicated region
    $region33: #{attention_pallas.2} parent=5 // pred_check
      _
    $region34: #{attention_pallas.2} parent=5 // pred_check_branch
      %243 = sbr.rel (%p240) target = $region36
    $region35: #{attention_pallas.2} parent=5 // pred_region
      %s244 = ssub.s32 %s13, 1
      %p245 = scmp.lt.s32.totalorder %s22, 1
      %s246 = scalar_select %p245, %s22, 1
      %p247 = scmp.lt.s32.totalorder %s23, 0
      %s248 = scalar_select %p247, %s23, 0
      %s249 = sadd.s32 %s248, %s246
      %s250 = smul.addr %s249, 8
      %s251 = scalar_lea.vmem %s0, %s250
      %p252 = pneg %p53
      %p253 = pneg %p50
      %p254 = pneg %p74
      %p255 = pneg %p71
      %p256 = pneg %p95
      %p257 = pneg %p92
      %p258 = pneg %p116
      %p259 = pneg %p113
      %p260 = pneg %p144
      %p261 = pneg %p141
      %p262 = scmp.lt.s32.totalorder %s22, 1
      %s263 = scalar_select %p262, %s22, 1
      %p264 = scmp.lt.s32.totalorder %s23, 0
      %s265 = scalar_select %p264, %s23, 0
      %s266 = sadd.s32 %s265, %s263
      %s267 = smul.addr %s266, 4
      %s268 = scalar_lea.vmem %s4, %s267
      %p269 = pneg %p172
      %p270 = pneg %p169
      %p271 = scmp.lt.s32.totalorder %s22, 1
      %s272 = scalar_select %p271, %s22, 1
      %p273 = scmp.lt.s32.totalorder %s23, 0
      %s274 = scalar_select %p273, %s23, 0
      %s275 = sadd.s32 %s274, %s272
      %s276 = smul.addr %s275, 4
      %s277 = scalar_lea.vmem %s5, %s276
      %p278 = pneg %p200
      %p279 = pneg %p197
      %p280 = scmp.lt.s32.totalorder %s22, 1
      %s281 = scalar_select %p280, %s22, 1
      %p282 = scmp.lt.s32.totalorder %s23, 0
      %s283 = scalar_select %p282, %s23, 0
      %s284 = sadd.s32 %s283, %s281
      %s285 = smul.addr %s284, 4
      %s286 = scalar_lea.vmem %s6, %s285
      %p287 = scmp.lt.s32.totalorder %s22, 1
      %s288 = scalar_select %p287, %s22, 1
      %p289 = scmp.lt.s32.totalorder %s23, 0
      %s290 = scalar_select %p289, %s23, 0
      %s291 = sadd.s32 %s290, %s288
      %s292 = smul.addr %s291, 8
      %s293 = scalar_lea.vmem %s0, %s292
      %p294 = scmp.lt.s32.totalorder %s22, 1
      %s295 = scalar_select %p294, %s22, 1
      %p296 = scmp.lt.s32.totalorder %s23, 0
      %s297 = scalar_select %p296, %s23, 0
      %s298 = sadd.s32 %s297, %s295
      %s299 = smul.addr %s298, 4
      %s300 = scalar_lea.vmem %s4, %s299
      %p301 = scmp.lt.s32.totalorder %s22, 1
      %s302 = scalar_select %p301, %s22, 1
      %p303 = scmp.lt.s32.totalorder %s23, 0
      %s304 = scalar_select %p303, %s23, 0
      %s305 = sadd.s32 %s304, %s302
      %s306 = smul.addr %s305, 4
      %s307 = scalar_lea.vmem %s5, %s306
      %p308 = scmp.lt.s32.totalorder %s22, 1
      %s309 = scalar_select %p308, %s22, 1
      %p310 = scmp.lt.s32.totalorder %s23, 0
      %s311 = scalar_select %p310, %s23, 0
      %s312 = sadd.s32 %s311, %s309
      %s313 = smul.addr %s312, 4
      %s314 = scalar_lea.vmem %s6, %s313
      %v316 = vld [vmem:[%s293] sm:$0xff]
      %vm317 = vcmask 261120
      %v318 = vsel %vm317, %v316, 0.0
      %319 = vadd.xlane.f32.xlu0 %v318
      %v320 = vpop.xlane.xlu0 %319
      %v321 = vrcp.pop 32.0
      %v322 = vmul.f32 %v320, %v321
      %v323 = vsub.f32 %v316, %v322
      %v324 = vmul.f32 %v323, %v323
      %v325 = vsel %vm317, %v324, 0.0
      %326 = vadd.xlane.f32.xlu0 %v325
      %v327 = vpop.xlane.xlu0 %326
      %v328 = vmul.f32 %v327, %v321
      %v329 = vadd.f32 %v328, 1e-05
      %v330 = vrsqrt.pop %v329
      %v331 = vmul.f32 %v323, %v330
      %v332 = vld [vmem:[%s1] sm:$0x1]
      %v334 = vlaneseq
      %v335 = vshrl.u32 %v334, 7
      %v336 = vsub.s32 0, %v335
      %v337 = vrot.slane %v332, %v336
      %v339 = vmul.f32 %v331, %v337
      %v340 = vld [vmem:[%s2] sm:$0x1]
      %v342 = vlaneseq
      %v343 = vshrl.u32 %v342, 7
      %v344 = vsub.s32 0, %v343
      %v345 = vrot.slane %v340, %v344
      %v347 = vadd.f32 %v339, %v345
      %v348 = vpack.c.bf16 %v347, %v347
      %v349 = vld [vmem:[%s3] sm:$0xff]
      %v350 = vld [vmem:[%s3 + $0x8] sm:$0xff]
      %v351 = vld [vmem:[%s3 + $0x10] sm:$0xff]
      %v352 = vld [vmem:[%s3 + $0x18] sm:$0xff]
      %v357 = vunpack.c.l.b16 %v349
      %v358 = vunpack.c.h.b16 %v349
      %v359 = vunpack.c.l.b16 %v350
      %v360 = vunpack.c.h.b16 %v350
      %v361 = vunpack.c.l.b16 %v351
      %v362 = vunpack.c.h.b16 %v351
      %v363 = vunpack.c.l.b16 %v352
      %v364 = vunpack.c.h.b16 %v352
      %v365 = vpack.c.b16 %v359, %v357
      %v366 = vpack.c.b16 %v360, %v358
      %v367 = vpack.c.b16 %v363, %v361
      %v368 = vpack.c.b16 %v364, %v362
      %v374 = vsel %vm317, %v348, 0
      %376 = vmatprep.subr.bf16.mxu0 0
      %377 = vmatpush1.bf16.msra.mxu0 0
      %378 = vmatprep.subr.bf16.mxu0 0
      %379 = vmatpush1.bf16.msra.mxu0 0
      %380 = vmatprep.subr.bf16.mxu0 0
      %381 = vmatpush1.bf16.msra.mxu0 0
      %382 = vmatprep.subr.bf16.mxu0 0
      %383 = vmatpush1.bf16.msra.mxu0 0
      %384 = vmatprep.subr.bf16.mxu0 0
      %385 = vmatpush1.bf16.msra.mxu0 0
      %386 = vmatprep.subr.bf16.mxu0 0
      %387 = vmatpush1.bf16.msra.mxu0 0
      %388 = vmatprep.subr.bf16.mxu0 %v368
      %389 = vmatpush1.bf16.msra.mxu0 %v367
      %390 = vmatprep.subr.bf16.mxu0 %v366
      %391 = vmatpush1.bf16.msra.mxu0 %v365
      %392 = vmatprep.subr.bf16.mxu0 0
      %393 = vmatpush2.bf16.msra.mxu0 0
      %394 = vmatprep.subr.bf16.mxu0 0
      %395 = vmatpush2.bf16.msra.mxu0 0
      %396 = vmatprep.subr.bf16.mxu0 0
      %397 = vmatpush2.bf16.msra.mxu0 0
      %398 = vmatprep.subr.bf16.mxu0 0
      %399 = vmatpush2.bf16.msra.mxu0 0
      %400 = vmatprep.subr.bf16.mxu0 0
      %401 = vmatpush2.bf16.msra.mxu0 0
      %402 = vmatprep.subr.bf16.mxu0 0
      %403 = vmatpush2.bf16.msra.mxu0 0
      %404 = vmatprep.subr.bf16.mxu0 0
      %405 = vmatpush2.bf16.msra.mxu0 0
      %406 = vmatprep.subr.bf16.mxu0 0
      %407 = vmatpush2.bf16.msra.mxu0 0
      %408 = vmatprep.mubr.bf16.mxu0 0
      %409 = vmatmul.mubr.bf16.gmra.mxu0 %v374
      %v410 = vpop.f32.mrf.mxu0
      %v411 = vadd.f32 0.0, %v410
      %v412 = vpop.f32.mrf.mxu0
      %v413 = vadd.f32 0.0, %v412
      %v414 = vpop.f32.mrf.mxu0
      %v415 = vpop.f32.mrf.mxu0
      %416 = vdwg.mxu0
      %v417 = vpack.c.bf16 %v411, %v411
      %vm418 = vcmask 519168
      %419 = vst.msk [vmem:[%s300] sm:$0xf] %vm418, %v417
      %v421 = vunpack.c.l.b16 %v417
      %v422 = vpack.c.b16 %v421, %v421
      %423 = vrot.lane.b32.xlu0 %v422, 64
      %v424 = vpop.permute.xlu0 %423
      %426 = vst.msk [vmem:[%s307] sm:$0xf] %vm418, %v424
      %v427 = vpack.c.bf16 %v413, %v413
      %428 = vst.msk [vmem:[%s314] sm:$0xf] %vm418, %v427
      %p429 = scmp.lt.s32.totalorder %s22, 1
      %s430 = scalar_select %p429, %s22, 1
      %p431 = scmp.lt.s32.totalorder %s23, 0
      %s432 = scalar_select %p431, %s23, 0
      %s433 = sadd.s32 %s432, %s430
      %s434 = smul.addr %s433, 4
      %s435 = scalar_lea.vmem %s4, %s434
      %p436 = scmp.lt.s32.totalorder %s22, 1
      %s437 = scalar_select %p436, %s22, 1
      %p438 = scmp.lt.s32.totalorder %s23, 0
      %s439 = scalar_select %p438, %s23, 0
      %s440 = sadd.s32 %s439, %s437
      %s441 = smul.addr %s440, 4
      %s442 = scalar_lea.vmem %s5, %s441
      %p443 = scmp.lt.s32.totalorder %s22, 1
      %s444 = scalar_select %p443, %s22, 1
      %p445 = scmp.lt.s32.totalorder %s23, 0
      %s446 = scalar_select %p445, %s23, 0
      %s447 = sadd.s32 %s446, %s444
      %s448 = smul.addr %s447, 4
      %s449 = scalar_lea.vmem %s6, %s448
      // Predicated region
      $region37: #{attention_pallas.2} parent=35 // pred_check
        %p450 = pneg %p141
      $region38: #{attention_pallas.2} parent=35 // pred_check_branch
        %452 = sbr.rel (%p450) target = $region40
      $region39: #{attention_pallas.2} parent=35 // pred_region
        _
      $region40: #{attention_pallas.2} parent=35 // pred_fallthru
        _
      // Predicated region
      $region41: #{attention_pallas.2} parent=35 // pred_check
        %p453 = pneg %p169
      $region42: #{attention_pallas.2} parent=35 // pred_check_branch
        %455 = sbr.rel (%p453) target = $region44
      $region43: #{attention_pallas.2} parent=35 // pred_region
        _
      $region44: #{attention_pallas.2} parent=35 // pred_fallthru
        _
      // Predicated region
      $region45: #{attention_pallas.2} parent=35 // pred_check
        %p456 = pneg %p197
      $region46: #{attention_pallas.2} parent=35 // pred_check_branch
        %458 = sbr.rel (%p456) target = $region48
      $region47: #{attention_pallas.2} parent=35 // pred_region
        _
      $region48: #{attention_pallas.2} parent=35 // pred_fallthru
        _
    $region36: #{attention_pallas.2} parent=5 // pred_fallthru
      _
    %p459 = scmp.le.s32.totalorder 2, %s13
    // Predicated region
    $region49: #{attention_pallas.2} parent=5 // pred_check
      %p460 = pneg %p459
    $region50: #{attention_pallas.2} parent=5 // pred_check_branch
      %462 = sbr.rel (%p460) target = $region52
    $region51: #{attention_pallas.2} parent=5 // pred_region
      %s463 = ssub.s32 %s13, 2
      // Predicated region
      $region53: #{attention_pallas.2} parent=51 // pred_check
        %p464 = pneg %p147
      $region54: #{attention_pallas.2} parent=51 // pred_check_branch
        %466 = sbr.rel (%p464) target = $region56
      $region55: #{attention_pallas.2} parent=51 // pred_region
        %p467 = scmp.lt.s32.totalorder %s24, 1
        %s468 = scalar_select %p467, %s24, 1
        %p469 = scmp.lt.s32.totalorder %s25, 0
        %s470 = scalar_select %p469, %s25, 0
        %s471 = sadd.s32 %s470, %s468
        %s472 = smul.addr %s471, 4
        %s473 = scalar_lea.vmem %s4, %s472
      $region56: #{attention_pallas.2} parent=51 // pred_fallthru
        _
      // Predicated region
      $region57: #{attention_pallas.2} parent=51 // pred_check
        %p474 = pneg %p175
      $region58: #{attention_pallas.2} parent=51 // pred_check_branch
        %476 = sbr.rel (%p474) target = $region60
      $region59: #{attention_pallas.2} parent=51 // pred_region
        %p477 = scmp.lt.s32.totalorder %s24, 1
        %s478 = scalar_select %p477, %s24, 1
        %p479 = scmp.lt.s32.totalorder %s25, 0
        %s480 = scalar_select %p479, %s25, 0
        %s481 = sadd.s32 %s480, %s478
        %s482 = smul.addr %s481, 4
        %s483 = scalar_lea.vmem %s5, %s482
      $region60: #{attention_pallas.2} parent=51 // pred_fallthru
        _
      // Predicated region
      $region61: #{attention_pallas.2} parent=51 // pred_check
        %p484 = pneg %p203
      $region62: #{attention_pallas.2} parent=51 // pred_check_branch
        %486 = sbr.rel (%p484) target = $region64
      $region63: #{attention_pallas.2} parent=51 // pred_region
        %p487 = scmp.lt.s32.totalorder %s24, 1
        %s488 = scalar_select %p487, %s24, 1
        %p489 = scmp.lt.s32.totalorder %s25, 0
        %s490 = scalar_select %p489, %s25, 0
        %s491 = sadd.s32 %s490, %s488
        %s492 = smul.addr %s491, 4
        %s493 = scalar_lea.vmem %s6, %s492
      $region64: #{attention_pallas.2} parent=51 // pred_fallthru
        _
    $region52: #{attention_pallas.2} parent=5 // pred_fallthru
      _
  $region6: #{attention_pallas.2} parent=0 // loop_footer
    %s17 = sadd.s32 1, %s13
  $region7: #{attention_pallas.2} parent=0 // loop_footer_branch
    %12 = sbr.rel target = $region3
  $region8: #{attention_pallas.2} parent=0 // loop_exit
    _

// kernel: attention_pallas.3
$region0: #{attention_pallas.3}
  #allocation0 [shape = 'u32[]', space=smem, size = 0x4, offset = 0x4, fixed_abs, tag = 'smem constant byte address 0x4 - core index']
  #allocation1 [shape = 'u32[144,128]{1,0:T(1,128)}', space=vmem, size = 0x12000, scoped, tag = 'internal scratch']
  #allocation2 [shape = 'f32[8,4]{1,0:T(8,128)}', space=vmem, size = 0x1000, scoped, tag = 'scratch operand']
  #allocation3 [shape = 'f32[8,4]{1,0:T(8,128)}', space=vmem, size = 0x1000, scoped, tag = 'scratch operand']
  #allocation4 [shape = 'f32[8,64]{1,0:T(8,128)}', space=vmem, size = 0x1000, scoped, tag = 'scratch operand']
  %s0 = inlined_call_operand.vmem [shape: bf16[2,8,64], index: 0, kind: input, shape index: {}]
  %s1 = inlined_call_operand.vmem [shape: bf16[2,8,64], index: 1, kind: input, shape index: {}]
  %s2 = inlined_call_operand.vmem [shape: bf16[2,8,64], index: 2, kind: input, shape index: {}]
  %s3 = inlined_call_operand.vmem [shape: bf16[64,32], index: 3, kind: input, shape index: {}]
  %s4 = inlined_call_operand.vmem [shape: f32[1,32], index: 4, kind: input, shape index: {}]
  %s5 = inlined_call_operand.hbm [shape: f32[2,8,32], index: 5, kind: output, shape index: {}]
  %s6 = sld [smem:[#allocation0]]
  $region61: #{attention_pallas.3} parent=0
    _
  %s8 = ssub.s32 1, %s6
  %s9 = scalar_select 0, %s8, %s6
  $region1: #{attention_pallas.3} parent=0
    #allocation5 [shape = 'u8[8192]{0}', space=vmem, size = 0x2000, scoped, tag = 'output window, operand 0']
    #allocation6 [shape = 's32[2]{0}', space=sflag, size = 0x8, scoped, tag = 'scoped memory for attention_pallas.3']
    %10 = vsyncpa [#allocation6], 0
    %s11 = scalar_lea.sflag [#allocation6], 1
    %12 = vsyncpa %s11, 0
    loop: start=0, step=1, limit=4
    $region2: #{attention_pallas.3} parent=1 // loop_pre_header
      _
    $region3: #{attention_pallas.3} parent=1 // loop_header
      %s14 = sphi 0, %s18
      %p15 = scmp.ge.s32.totalorder %s14, 4
      %s21 = sphi 0, %s40
      %s22 = sphi 0, %s36
      %s23 = sphi 0, %s32
      %s24 = sphi 0, %s21
      %s25 = sphi 0, %s22
      %s26 = sphi 0, %s23
      %s27 = sphi 0, %s24
      %s28 = sphi 0, %s25
      %s29 = sphi 0, %s26
      %s45 = sphi 0, %s47
      %s48 = sphi 0, %s45
      %s49 = sphi 0, %s48
      %s65 = sphi 0, %s49
      %s73 = sphi 0, %s75
      %s76 = sphi 0, %s73
      %s77 = sphi 0, %s76
      %s93 = sphi 0, %s77
      %s101 = sphi 0, %s103
      %s104 = sphi 0, %s101
      %s105 = sphi 0, %s104
      %s121 = sphi 0, %s105
      %s125 = sphi 0, %s125
      %s127 = sphi 0, %s125
      %s128 = sphi 0, %s127
      %s142 = sphi 0, %s128
      %s146 = sphi 0, %s146
      %s148 = sphi 0, %s146
      %s149 = sphi 0, %s148
      %s163 = sphi 0, %s149
      %s171 = sphi 0, %s173
      %s174 = sphi 0, %s171
      %s175 = sphi 0, %s174
      %s191 = sphi 0, %s175
    $region4: #{attention_pallas.3} parent=1 // loop_header_branch
      %17 = sbr.rel (%p15) target = $region8
    $region5: #{attention_pallas.3} parent=1 // loop_body
      %s19 = ssub.s32 %s14, 1
      %s20 = ssub.s32 %s14, 2
      %s30 = sadd.s32 1, %s23
      %p31 = scmp.ge.s32.totalorder %s30, 1
      %s32 = scalar_select %p31, 0, %s30
      %s33 = sadd.s32 1, %s22
      %s34 = scalar_select %p31, %s33, %s22
      %p35 = scmp.ge.s32.totalorder %s34, 1
      %s36 = scalar_select %p35, 0, %s34
      %s37 = sadd.s32 1, %s21
      %s38 = scalar_select %p35, %s37, %s21
      %p39 = scmp.ge.s32.totalorder %s38, 2
      %s40 = scalar_select %p39, 0, %s38
      %s41 = ssub.s32 %s21, %s40
      %s42 = ssub.s32 %s22, %s36
      %s43 = sor.u32 %s41, %s42
      %p44 = scmp.eq.s32.totalorder %s43, 0
      %s46 = sadd.s32 %s45, 1
      %s47 = scalar_select %p44, %s45, %s46
      %p50 = pneg %p44
      %p51 = scmp.eq.s32.totalorder %s14, 1
      %p52 = por %p50, %p51
      %p53 = scmp.ne.s32.totalorder %s45, %s48
      %p54 = scmp.eq.s32.totalorder %s14, 0
      %p55 = por %p53, %p54
      %p56 = scmp.ne.s32.totalorder %s45, %s48
      %p57 = scmp.eq.s32.totalorder %s19, 1
      %p58 = por %p56, %p57
      %p59 = scmp.ne.s32.totalorder %s48, %s49
      %p60 = scmp.eq.s32.totalorder %s19, 0
      %p61 = por %p59, %p60
      %p62 = scmp.ne.s32.totalorder %s48, %s49
      %p63 = scmp.eq.s32.totalorder %s20, 1
      %p64 = por %p62, %p63
      %p66 = scmp.ne.s32.totalorder %s49, %s65
      %p67 = scmp.eq.s32.totalorder %s20, 0
      %p68 = por %p66, %p67
      %s69 = ssub.s32 %s21, %s40
      %s70 = ssub.s32 %s23, %s32
      %s71 = sor.u32 %s69, %s70
      %p72 = scmp.eq.s32.totalorder %s71, 0
      %s74 = sadd.s32 %s73, 1
      %s75 = scalar_select %p72, %s73, %s74
      %p78 = pneg %p72
      %p79 = scmp.eq.s32.totalorder %s14, 1
      %p80 = por %p78, %p79
      %p81 = scmp.ne.s32.totalorder %s73, %s76
      %p82 = scmp.eq.s32.totalorder %s14, 0
      %p83 = por %p81, %p82
      %p84 = scmp.ne.s32.totalorder %s73, %s76
      %p85 = scmp.eq.s32.totalorder %s19, 1
      %p86 = por %p84, %p85
      %p87 = scmp.ne.s32.totalorder %s76, %s77
      %p88 = scmp.eq.s32.totalorder %s19, 0
      %p89 = por %p87, %p88
      %p90 = scmp.ne.s32.totalorder %s76, %s77
      %p91 = scmp.eq.s32.totalorder %s20, 1
      %p92 = por %p90, %p91
      %p94 = scmp.ne.s32.totalorder %s77, %s93
      %p95 = scmp.eq.s32.totalorder %s20, 0
      %p96 = por %p94, %p95
      %s97 = ssub.s32 %s21, %s40
      %s98 = ssub.s32 %s23, %s32
      %s99 = sor.u32 %s97, %s98
      %p100 = scmp.eq.s32.totalorder %s99, 0
      %s102 = sadd.s32 %s101, 1
      %s103 = scalar_select %p100, %s101, %s102
      %p106 = pneg %p100
      %p107 = scmp.eq.s32.totalorder %s14, 1
      %p108 = por %p106, %p107
      %p109 = scmp.ne.s32.totalorder %s101, %s104
      %p110 = scmp.eq.s32.totalorder %s14, 0
      %p111 = por %p109, %p110
      %p112 = scmp.ne.s32.totalorder %s101, %s104
      %p113 = scmp.eq.s32.totalorder %s19, 1
      %p114 = por %p112, %p113
      %p115 = scmp.ne.s32.totalorder %s104, %s105
      %p116 = scmp.eq.s32.totalorder %s19, 0
      %p117 = por %p115, %p116
      %p118 = scmp.ne.s32.totalorder %s104, %s105
      %p119 = scmp.eq.s32.totalorder %s20, 1
      %p120 = por %p118, %p119
      %p122 = scmp.ne.s32.totalorder %s105, %s121
      %p123 = scmp.eq.s32.totalorder %s20, 0
      %p124 = por %p122, %p123
      %s126 = sadd.s32 %s125, 1
      %p129 = scmp.eq.s32.totalorder %s14, 1
      %p130 = scmp.ne.s32.totalorder %s125, %s127
      %p131 = scmp.eq.s32.totalorder %s14, 0
      %p132 = por %p130, %p131
      %p133 = scmp.ne.s32.totalorder %s125, %s127
      %p134 = scmp.eq.s32.totalorder %s19, 1
      %p135 = por %p133, %p134
      %p136 = scmp.ne.s32.totalorder %s127, %s128
      %p137 = scmp.eq.s32.totalorder %s19, 0
      %p138 = por %p136, %p137
      %p139 = scmp.ne.s32.totalorder %s127, %s128
      %p140 = scmp.eq.s32.totalorder %s20, 1
      %p141 = por %p139, %p140
      %p143 = scmp.ne.s32.totalorder %s128, %s142
      %p144 = scmp.eq.s32.totalorder %s20, 0
      %p145 = por %p143, %p144
      %s147 = sadd.s32 %s146, 1
      %p150 = scmp.eq.s32.totalorder %s14, 1
      %p151 = scmp.ne.s32.totalorder %s146, %s148
      %p152 = scmp.eq.s32.totalorder %s14, 0
      %p153 = por %p151, %p152
      %p154 = scmp.ne.s32.totalorder %s146, %s148
      %p155 = scmp.eq.s32.totalorder %s19, 1
      %p156 = por %p154, %p155
      %p157 = scmp.ne.s32.totalorder %s148, %s149
      %p158 = scmp.eq.s32.totalorder %s19, 0
      %p159 = por %p157, %p158
      %p160 = scmp.ne.s32.totalorder %s148, %s149
      %p161 = scmp.eq.s32.totalorder %s20, 1
      %p162 = por %p160, %p161
      %p164 = scmp.ne.s32.totalorder %s149, %s163
      %p165 = scmp.eq.s32.totalorder %s20, 0
      %p166 = por %p164, %p165
      %s167 = ssub.s32 %s21, %s40
      %s168 = ssub.s32 %s22, %s36
      %s169 = sor.u32 %s167, %s168
      %p170 = scmp.eq.s32.totalorder %s169, 0
      %s172 = sadd.s32 %s171, 1
      %s173 = scalar_select %p170, %s171, %s172
      %p176 = pneg %p170
      %p177 = scmp.eq.s32.totalorder %s14, 1
      %p178 = por %p176, %p177
      %p179 = scmp.ne.s32.totalorder %s171, %s174
      %p180 = scmp.eq.s32.totalorder %s14, 0
      %p181 = por %p179, %p180
      %p182 = scmp.ne.s32.totalorder %s171, %s174
      %p183 = scmp.eq.s32.totalorder %s19, 1
      %p184 = por %p182, %p183
      %p185 = scmp.ne.s32.totalorder %s174, %s175
      %p186 = scmp.eq.s32.totalorder %s19, 0
      %p187 = por %p185, %p186
      %p188 = scmp.ne.s32.totalorder %s174, %s175
      %p189 = scmp.eq.s32.totalorder %s20, 1
      %p190 = por %p188, %p189
      %p192 = scmp.ne.s32.totalorder %s175, %s191
      %p193 = scmp.eq.s32.totalorder %s20, 0
      %p194 = por %p192, %p193
      %p195 = scmp.le.s32.totalorder 1, %s14
      %p196 = scmp.lt.s32.totalorder %s14, 3
      %p197 = pnand %p195, %p196
      %p198 = pneg %p197
      // Predicated region
      $region9: #{attention_pallas.3} parent=5 // pred_check
        _
      $region10: #{attention_pallas.3} parent=5 // pred_check_branch
        %200 = sbr.rel (%p197) target = $region12
      $region11: #{attention_pallas.3} parent=5 // pred_region
        %s201 = ssub.s32 %s14, 1
        // Predicated region
        $region13: #{attention_pallas.3} parent=11 // pred_check
          %p202 = pneg %p138
        $region14: #{attention_pallas.3} parent=11 // pred_check_branch
          %204 = sbr.rel (%p202) target = $region16
        $region15: #{attention_pallas.3} parent=11 // pred_region
          _
        $region16: #{attention_pallas.3} parent=11 // pred_fallthru
          _
        // Predicated region
        $region17: #{attention_pallas.3} parent=11 // pred_check
          %p205 = pneg %p159
        $region18: #{attention_pallas.3} parent=11 // pred_check_branch
          %207 = sbr.rel (%p205) target = $region20
        $region19: #{attention_pallas.3} parent=11 // pred_region
          _
        $region20: #{attention_pallas.3} parent=11 // pred_fallthru
          _
      $region12: #{attention_pallas.3} parent=5 // pred_fallthru
        _
      %p208 = scmp.lt.s32.totalorder %s14, 2
      // Predicated region
      $region21: #{attention_pallas.3} parent=5 // pred_check
        %p209 = pneg %p208
      $region22: #{attention_pallas.3} parent=5 // pred_check_branch
        %211 = sbr.rel (%p209) target = $region24
      $region23: #{attention_pallas.3} parent=5 // pred_region
        // Predicated region
        $region25: #{attention_pallas.3} parent=23 // pred_check
          %p212 = pneg %p55
        $region26: #{attention_pallas.3} parent=23 // pred_check_branch
          %214 = sbr.rel (%p212) target = $region28
        $region27: #{attention_pallas.3} parent=23 // pred_region
          %p215 = scmp.lt.s32.totalorder %s21, 1
          %s216 = scalar_select %p215, %s21, 1
          %p217 = scmp.lt.s32.totalorder %s22, 0
          %s218 = scalar_select %p217, %s22, 0
          %s219 = sadd.s32 %s218, %s216
          %s220 = smul.addr %s219, 4
          %s221 = scalar_lea.vmem %s0, %s220
        $region28: #{attention_pallas.3} parent=23 // pred_fallthru
          _
        // Predicated region
        $region29: #{attention_pallas.3} parent=23 // pred_check
          %p222 = pneg %p83
        $region30: #{attention_pallas.3} parent=23 // pred_check_branch
          %224 = sbr.rel (%p222) target = $region32
        $region31: #{attention_pallas.3} parent=23 // pred_region
          %p225 = scmp.lt.s32.totalorder %s21, 1
          %s226 = scalar_select %p225, %s21, 1
          %p227 = scmp.lt.s32.totalorder %s23, 0
          %s228 = scalar_select %p227, %s23, 0
          %s229 = sadd.s32 %s228, %s226
          %s230 = smul.addr %s229, 4
          %s231 = scalar_lea.vmem %s1, %s230
        $region32: #{attention_pallas.3} parent=23 // pred_fallthru
          _
        // Predicated region
        $region33: #{attention_pallas.3} parent=23 // pred_check
          %p232 = pneg %p111
        $region34: #{attention_pallas.3} parent=23 // pred_check_branch
          %234 = sbr.rel (%p232) target = $region36
        $region35: #{attention_pallas.3} parent=23 // pred_region
          %p235 = scmp.lt.s32.totalorder %s21, 1
          %s236 = scalar_select %p235, %s21, 1
          %p237 = scmp.lt.s32.totalorder %s23, 0
          %s238 = scalar_select %p237, %s23, 0
          %s239 = sadd.s32 %s238, %s236
          %s240 = smul.addr %s239, 4
          %s241 = scalar_lea.vmem %s2, %s240
        $region36: #{attention_pallas.3} parent=23 // pred_fallthru
          _
      $region24: #{attention_pallas.3} parent=5 // pred_fallthru
        _
      %p242 = scmp.le.s32.totalorder 1, %s14
      %p243 = scmp.lt.s32.totalorder %s14, 3
      %p244 = pnand %p242, %p243
      %p245 = pneg %p244
      // Predicated region
      $region37: #{attention_pallas.3} parent=5 // pred_check
        _
      $region38: #{attention_pallas.3} parent=5 // pred_check_branch
        %247 = sbr.rel (%p244) target = $region40
      $region39: #{attention_pallas.3} parent=5 // pred_region
        %s248 = ssub.s32 %s14, 1
        %p249 = scmp.lt.s32.totalorder %s24, 1
        %s250 = scalar_select %p249, %s24, 1
        %p251 = scmp.lt.s32.totalorder %s25, 0
        %s252 = scalar_select %p251, %s25, 0
        %s253 = sadd.s32 %s252, %s250
        %s254 = smul.addr %s253, 4
        %s255 = scalar_lea.vmem %s0, %s254
        %p256 = pneg %p61
        %p257 = pneg %p58
        %p258 = scmp.lt.s32.totalorder %s24, 1
        %s259 = scalar_select %p258, %s24, 1
        %p260 = scmp.lt.s32.totalorder %s26, 0
        %s261 = scalar_select %p260, %s26, 0
        %s262 = sadd.s32 %s261, %s259
        %s263 = smul.addr %s262, 4
        %s264 = scalar_lea.vmem %s1, %s263
        %p265 = pneg %p89
        %p266 = pneg %p86
        %p267 = scmp.lt.s32.totalorder %s24, 1
        %s268 = scalar_select %p267, %s24, 1
        %p269 = scmp.lt.s32.totalorder %s26, 0
        %s270 = scalar_select %p269, %s26, 0
        %s271 = sadd.s32 %s270, %s268
        %s272 = smul.addr %s271, 4
        %s273 = scalar_lea.vmem %s2, %s272
        %p274 = pneg %p117
        %p275 = pneg %p114
        %p276 = pneg %p138
        %p277 = pneg %p135
        %p278 = pneg %p159
        %p279 = pneg %p156
        %p280 = pneg %p187
        %p281 = pneg %p184
        %s282 = sand.u32 %s174, 1
        %s283 = scalar_lea.sflag [#allocation6], %s282
        %s284 = sand.u32 %s174, 1
        %s285 = smul.addr %s284, 8
        %s286 = scalar_lea.vmem [#allocation5], %s285
        %p287 = scmp.lt.s32.totalorder %s24, 1
        %s288 = scalar_select %p287, %s24, 1
        %p289 = scmp.lt.s32.totalorder %s25, 0
        %s290 = scalar_select %p289, %s25, 0
        %s291 = sadd.s32 %s290, %s288
        %s292 = smul.addr %s291, 4
        %s293 = scalar_lea.vmem %s0, %s292
        %p294 = scmp.lt.s32.totalorder %s24, 1
        %s295 = scalar_select %p294, %s24, 1
        %p296 = scmp.lt.s32.totalorder %s26, 0
        %s297 = scalar_select %p296, %s26, 0
        %s298 = sadd.s32 %s297, %s295
        %s299 = smul.addr %s298, 4
        %s300 = scalar_lea.vmem %s1, %s299
        %p301 = scmp.lt.s32.totalorder %s24, 1
        %s302 = scalar_select %p301, %s24, 1
        %p303 = scmp.lt.s32.totalorder %s26, 0
        %s304 = scalar_select %p303, %s26, 0
        %s305 = sadd.s32 %s304, %s302
        %s306 = smul.addr %s305, 4
        %s307 = scalar_lea.vmem %s2, %s306
        %p309 = scmp.eq.s32.totalorder %s26, 0
        // Predicated region
        $region41: #{attention_pallas.3} parent=39 // pred_check
          %p310 = pneg %p309
        $region42: #{attention_pallas.3} parent=39 // pred_check_branch
          %312 = sbr.rel (%p310) target = $region44
        $region43: #{attention_pallas.3} parent=39 // pred_region
          %vm313 = vcmask 31744
          %314 = vst.msk [vmem:[#allocation2] sm:$0xff] %vm313, -inf
          %315 = vst.msk [vmem:[#allocation3] sm:$0xff] %vm313, 0.0
          %vm316 = vcmask 523264
          %317 = vst.msk [vmem:[#allocation4] sm:$0xff] %vm316, 0.0
        $region44: #{attention_pallas.3} parent=39 // pred_fallthru
          _
        %v318 = vld [vmem:[%s293] sm:$0xf]
        %v319 = vld [vmem:[%s300] sm:$0xf]
        %v320 = vld [vmem:[%s307] sm:$0xf]
        %vm321 = vcmask 130048
        %v323 = vsel %vm321, %v318, 0
        %v326 = vsel %vm321, %v319, 0
        %328 = vmatprep.subr.bf16.mxu0 0
        %329 = vmatpush1.bf16.xpose.msra.mxu0 0
        %330 = vmatprep.subr.bf16.mxu0 0
        %331 = vmatpush1.bf16.xpose.msra.mxu0 0
        %332 = vmatprep.subr.bf16.mxu0 0
        %333 = vmatpush1.bf16.xpose.msra.mxu0 0
        %334 = vmatprep.subr.bf16.mxu0 0
        %335 = vmatpush1.bf16.xpose.msra.mxu0 0
        %336 = vmatprep.subr.bf16.mxu0 0
        %337 = vmatpush1.bf16.xpose.msra.mxu0 0
        %338 = vmatprep.subr.bf16.mxu0 0
        %339 = vmatpush1.bf16.xpose.msra.mxu0 0
        %340 = vmatprep.subr.bf16.mxu0 0
        %341 = vmatpush1.bf16.xpose.msra.mxu0 0
        %342 = vmatprep.subr.bf16.mxu0 0
        %343 = vmatpush1.bf16.xpose.msra.mxu0 %v326
        %344 = vmatprep.subr.bf16.mxu0 0
        %345 = vmatpush2.bf16.xpose.msra.mxu0 0
        %346 = vmatprep.subr.bf16.mxu0 0
        %347 = vmatpush2.bf16.xpose.msra.mxu0 0
        %348 = vmatprep.subr.bf16.mxu0 0
        %349 = vmatpush2.bf16.xpose.msra.mxu0 0
        %350 = vmatprep.subr.bf16.mxu0 0
        %351 = vmatpush2.bf16.xpose.msra.mxu0 0
        %352 = vmatprep.subr.bf16.mxu0 0
        %353 = vmatpush2.bf16.xpose.msra.mxu0 0
        %354 = vmatprep.subr.bf16.mxu0 0
        %355 = vmatpush2.bf16.xpose.msra.mxu0 0
        %356 = vmatprep.subr.bf16.mxu0 0
        %357 = vmatpush2.bf16.xpose.msra.mxu0 0
        %358 = vmatprep.subr.bf16.mxu0 0
        %359 = vmatpush2.bf16.xpose.msra.mxu0 0
        %360 = vmatprep.mubr.bf16.mxu0 0
        %361 = vmatmul.mubr.bf16.gmra.mxu0 %v323
        %v362 = vpop.f32.mrf.mxu0
        %v363 = vadd.f32 0.0, %v362
        %v364 = vpop.f32.mrf.mxu0
        %v365 = vpop.f32.mrf.mxu0
        %v366 = vpop.f32.mrf.mxu0
        %367 = vdwg.mxu0
        %v368 = vld [vmem:[#allocation2] sm:$0xff]
        %vm369 = vcmask 64512
        %v370 = vsel %vm369, %v363, -inf
        %371 = vmax.xlane.f32.xlu0 %v370
        %v372 = vpop.xlane.xlu0 %371
        %v373 = vmax.f32 %v368, %v372
        %v374 = vsub.f32 %v368, %v373
        %v375 = vmul.f32 %v374, 1.442695
        %v376 = vpow.pop %v375
        %378 = vset.pattern.permute.xlu0 0
        %379 = vperm.xlu0 %378, %v373
        %v380 = vpop.permute.xlu0 %379
        %v382 = vsub.f32 %v363, %v380
        %v383 = vmul.f32 %v382, 1.442695
        %v384 = vpow.pop %v383
        %v385 = vld [vmem:[#allocation3] sm:$0xff]
        %v386 = vmul.f32 %v376, %v385
        %v387 = vsel %vm369, %v384, 0.0
        %388 = vadd.xlane.f32.xlu0 %v387
        %v389 = vpop.xlane.xlu0 %388
        %v390 = vadd.f32 %v386, %v389
        %vm391 = vcmask 7168
        %392 = vst.msk [vmem:[#allocation3] sm:$0xff] %vm391, %v390
        %v393 = vld [vmem:[#allocation4] sm:$0xff]
        %395 = vset.pattern.permute.xlu0 0
        %396 = vperm.xlu0 %395, %v376
        %v397 = vpop.permute.xlu0 %396
        %v399 = vmul.f32 %v397, %v393
        %v400 = vpack.c.bf16 %v384, %v384
        %v402 = vsel %vm369, %v400, 0
        %vm404 = vcmask 1043456
        %v406 = vsel %vm404, %v320, 0
        %408 = vmatprep.subr.bf16.mxu0 0
        %409 = vmatpush1.bf16.msra.mxu0 0
        %410 = vmatprep.subr.bf16.mxu0 0
        %411 = vmatpush1.bf16.msra.mxu0 0
        %412 = vmatprep.subr.bf16.mxu0 0
        %413 = vmatpush1.bf16.msra.mxu0 0
        %414 = vmatprep.subr.bf16.mxu0 0
        %415 = vmatpush1.bf16.msra.mxu0 0
        %416 = vmatprep.subr.bf16.mxu0 0
        %417 = vmatpush1.bf16.msra.mxu0 0
        %418 = vmatprep.subr.bf16.mxu0 0
        %419 = vmatpush1.bf16.msra.mxu0 0
        %420 = vmatprep.subr.bf16.mxu0 0
        %421 = vmatpush1.bf16.msra.mxu0 0
        %422 = vmatprep.subr.bf16.mxu0 0
        %423 = vmatpush1.bf16.msra.mxu0 %v406
        %424 = vmatprep.subr.bf16.mxu0 0
        %425 = vmatpush2.bf16.msra.mxu0 0
        %426 = vmatprep.subr.bf16.mxu0 0
        %427 = vmatpush2.bf16.msra.mxu0 0
        %428 = vmatprep.subr.bf16.mxu0 0
        %429 = vmatpush2.bf16.msra.mxu0 0
        %430 = vmatprep.subr.bf16.mxu0 0
        %431 = vmatpush2.bf16.msra.mxu0 0
        %432 = vmatprep.subr.bf16.mxu0 0
        %433 = vmatpush2.bf16.msra.mxu0 0
        %434 = vmatprep.subr.bf16.mxu0 0
        %435 = vmatpush2.bf16.msra.mxu0 0
        %436 = vmatprep.subr.bf16.mxu0 0
        %437 = vmatpush2.bf16.msra.mxu0 0
        %438 = vmatprep.subr.bf16.mxu0 0
        %439 = vmatpush2.bf16.msra.mxu0 0
        %440 = vmatprep.mubr.bf16.mxu0 0
        %441 = vmatmul.mubr.bf16.gmra.mxu0 %v402
        %v442 = vpop.f32.mrf.mxu0
        %v443 = vadd.f32 0.0, %v442
        %v444 = vpop.f32.mrf.mxu0
        %v445 = vpop.f32.mrf.mxu0
        %v446 = vpop.f32.mrf.mxu0
        %447 = vdwg.mxu0
        %v448 = vadd.f32 %v399, %v443
        %449 = vst.msk [vmem:[#allocation4] sm:$0xff] %vm321, %v448
        %450 = vst.msk [vmem:[#allocation2] sm:$0xff] %vm391, %v373
        %v452 = vunpack.c.l.b16 %v318
        %v453 = vpack.c.b16 %v452, %v452
        %454 = vrot.lane.b32.xlu0 %v453, 112
        %v455 = vpop.permute.xlu0 %454
        %v457 = vunpack.c.l.b16 %v319
        %v458 = vpack.c.b16 %v457, %v457
        %459 = vrot.lane.b32.xlu0 %v458, 112
        %v460 = vpop.permute.xlu0 %459
        %v462 = vsel %vm321, %v455, 0
        %v465 = vsel %vm321, %v460, 0
        %467 = vmatprep.subr.bf16.mxu0 0
        %468 = vmatpush1.bf16.xpose.msra.mxu0 0
        %469 = vmatprep.subr.bf16.mxu0 0
        %470 = vmatpush1.bf16.xpose.msra.mxu0 0
        %471 = vmatprep.subr.bf16.mxu0 0
        %472 = vmatpush1.bf16.xpose.msra.mxu0 0
        %473 = vmatprep.subr.bf16.mxu0 0
        %474 = vmatpush1.bf16.xpose.msra.mxu0 0
        %475 = vmatprep.subr.bf16.mxu0 0
        %476 = vmatpush1.bf16.xpose.msra.mxu0 0
        %477 = vmatprep.subr.bf16.mxu0 0
        %478 = vmatpush1.bf16.xpose.msra.mxu0 0
        %479 = vmatprep.subr.bf16.mxu0 0
        %480 = vmatpush1.bf16.xpose.msra.mxu0 0
        %481 = vmatprep.subr.bf16.mxu0 0
        %482 = vmatpush1.bf16.xpose.msra.mxu0 %v465
        %483 = vmatprep.subr.bf16.mxu0 0
        %484 = vmatpush2.bf16.xpose.msra.mxu0 0
        %485 = vmatprep.subr.bf16.mxu0 0
        %486 = vmatpush2.bf16.xpose.msra.mxu0 0
        %487 = vmatprep.subr.bf16.mxu0 0
        %488 = vmatpush2.bf16.xpose.msra.mxu0 0
        %489 = vmatprep.subr.bf16.mxu0 0
        %490 = vmatpush2.bf16.xpose.msra.mxu0 0
        %491 = vmatprep.subr.bf16.mxu0 0
        %492 = vmatpush2.bf16.xpose.msra.mxu0 0
        %493 = vmatprep.subr.bf16.mxu0 0
        %494 = vmatpush2.bf16.xpose.msra.mxu0 0
        %495 = vmatprep.subr.bf16.mxu0 0
        %496 = vmatpush2.bf16.xpose.msra.mxu0 0
        %497 = vmatprep.subr.bf16.mxu0 0
        %498 = vmatpush2.bf16.xpose.msra.mxu0 0
        %499 = vmatprep.mubr.bf16.mxu0 0
        %500 = vmatmul.mubr.bf16.gmra.mxu0 %v462
        %v501 = vpop.f32.mrf.mxu0
        %v502 = vadd.f32 0.0, %v501
        %v503 = vpop.f32.mrf.mxu0
        %v504 = vpop.f32.mrf.mxu0
        %v505 = vpop.f32.mrf.mxu0
        %506 = vdwg.mxu0
        %v507 = vld [vmem:[#allocation2] sm:$0xff]
        %v508 = vsel %vm369, %v502, -inf
        %509 = vmax.xlane.f32.xlu0 %v508
        %v510 = vpop.xlane.xlu0 %509
        %v511 = vmax.f32 %v507, %v510
        %v512 = vsub.f32 %v507, %v511
        %v513 = vmul.f32 %v512, 1.442695
        %v514 = vpow.pop %v513
        %516 = vset.pattern.permute.xlu0 1
        %517 = vperm.xlu0 %516, %v511
        %v518 = vpop.permute.xlu0 %517
        %v520 = vsub.f32 %v502, %v518
        %v521 = vmul.f32 %v520, 1.442695
        %v522 = vpow.pop %v521
        %v523 = vld [vmem:[#allocation3] sm:$0xff]
        %v524 = vmul.f32 %v514, %v523
        %v525 = vsel %vm369, %v522, 0.0
        %526 = vadd.xlane.f32.xlu0 %v525
        %v527 = vpop.xlane.xlu0 %526
        %v528 = vadd.f32 %v524, %v527
        %vm529 = vcmask 15368
        %530 = vst.msk [vmem:[#allocation3] sm:$0xff] %vm529, %v528
        %v531 = vld [vmem:[#allocation4] sm:$0xff]
        %533 = vset.pattern.permute.xlu0 1
        %534 = vperm.xlu0 %533, %v514
        %v535 = vpop.permute.xlu0 %534
        %v537 = vmul.f32 %v535, %v531
        %v538 = vpack.c.bf16 %v522, %v522
        %v540 = vunpack.c.l.b16 %v320
        %v541 = vpack.c.b16 %v540, %v540
        %542 = vrot.lane.b32.xlu0 %v541, 112
        %v543 = vpop.permute.xlu0 %542
        %v545 = vsel %vm369, %v538, 0
        %v548 = vsel %vm404, %v543, 0
        %550 = vmatprep.subr.bf16.mxu0 0
        %551 = vmatpush1.bf16.msra.mxu0 0
        %552 = vmatprep.subr.bf16.mxu0 0
        %553 = vmatpush1.bf16.msra.mxu0 0
        %554 = vmatprep.subr.bf16.mxu0 0
        %555 = vmatpush1.bf16.msra.mxu0 0
        %556 = vmatprep.subr.bf16.mxu0 0
        %557 = vmatpush1.bf16.msra.mxu0 0
        %558 = vmatprep.subr.bf16.mxu0 0
        %559 = vmatpush1.bf16.msra.mxu0 0
        %560 = vmatprep.subr.bf16.mxu0 0
        %561 = vmatpush1.bf16.msra.mxu0 0
        %562 = vmatprep.subr.bf16.mxu0 0
        %563 = vmatpush1.bf16.msra.mxu0 0
        %564 = vmatprep.subr.bf16.mxu0 0
        %565 = vmatpush1.bf16.msra.mxu0 %v548
        %566 = vmatprep.subr.bf16.mxu0 0
        %567 = vmatpush2.bf16.msra.mxu0 0
        %568 = vmatprep.subr.bf16.mxu0 0
        %569 = vmatpush2.bf16.msra.mxu0 0
        %570 = vmatprep.subr.bf16.mxu0 0
        %571 = vmatpush2.bf16.msra.mxu0 0
        %572 = vmatprep.subr.bf16.mxu0 0
        %573 = vmatpush2.bf16.msra.mxu0 0
        %574 = vmatprep.subr.bf16.mxu0 0
        %575 = vmatpush2.bf16.msra.mxu0 0
        %576 = vmatprep.subr.bf16.mxu0 0
        %577 = vmatpush2.bf16.msra.mxu0 0
        %578 = vmatprep.subr.bf16.mxu0 0
        %579 = vmatpush2.bf16.msra.mxu0 0
        %580 = vmatprep.subr.bf16.mxu0 0
        %581 = vmatpush2.bf16.msra.mxu0 0
        %582 = vmatprep.mubr.bf16.mxu0 0
        %583 = vmatmul.mubr.bf16.gmra.mxu0 %v545
        %v584 = vpop.f32.mrf.mxu0
        %v585 = vadd.f32 0.0, %v584
        %v586 = vpop.f32.mrf.mxu0
        %v587 = vpop.f32.mrf.mxu0
        %v588 = vpop.f32.mrf.mxu0
        %589 = vdwg.mxu0
        %591 = vrot.lane.b32.xlu0 %v585, 16
        %v592 = vpop.permute.xlu0 %591
        %v594 = vadd.f32 %v537, %v592
        %vm595 = vcmask 261248
        %596 = vst.msk [vmem:[#allocation4] sm:$0xff] %vm595, %v594
        %597 = vst.msk [vmem:[#allocation2] sm:$0xff] %vm529, %v511
        %598 = vrot.lane.b32.xlu0 %v453, 96
        %v599 = vpop.permute.xlu0 %598
        %600 = vrot.lane.b32.xlu0 %v458, 96
        %v601 = vpop.permute.xlu0 %600
        %v603 = vsel %vm321, %v599, 0
        %v606 = vsel %vm321, %v601, 0
        %608 = vmatprep.subr.bf16.mxu0 0
        %609 = vmatpush1.bf16.xpose.msra.mxu0 0
        %610 = vmatprep.subr.bf16.mxu0 0
        %611 = vmatpush1.bf16.xpose.msra.mxu0 0
        %612 = vmatprep.subr.bf16.mxu0 0
        %613 = vmatpush1.bf16.xpose.msra.mxu0 0
        %614 = vmatprep.subr.bf16.mxu0 0
        %615 = vmatpush1.bf16.xpose.msra.mxu0 0
        %616 = vmatprep.subr.bf16.mxu0 0
        %617 = vmatpush1.bf16.xpose.msra.mxu0 0
        %618 = vmatprep.subr.bf16.mxu0 0
        %619 = vmatpush1.bf16.xpose.msra.mxu0 0
        %620 = vmatprep.subr.bf16.mxu0 0
        %621 = vmatpush1.bf16.xpose.msra.mxu0 0
        %622 = vmatprep.subr.bf16.mxu0 0
        %623 = vmatpush1.bf16.xpose.msra.mxu0 %v606
        %624 = vmatprep.subr.bf16.mxu0 0
        %625 = vmatpush2.bf16.xpose.msra.mxu0 0
        %626 = vmatprep.subr.bf16.mxu0 0
        %627 = vmatpush2.bf16.xpose.msra.mxu0 0
        %628 = vmatprep.subr.bf16.mxu0 0
        %629 = vmatpush2.bf16.xpose.msra.mxu0 0
        %630 = vmatprep.subr.bf16.mxu0 0
        %631 = vmatpush2.bf16.xpose.msra.mxu0 0
        %632 = vmatprep.subr.bf16.mxu0 0
        %633 = vmatpush2.bf16.xpose.msra.mxu0 0
        %634 = vmatprep.subr.bf16.mxu0 0
        %635 = vmatpush2.bf16.xpose.msra.mxu0 0
        %636 = vmatprep.subr.bf16.mxu0 0
        %637 = vmatpush2.bf16.xpose.msra.mxu0 0
        %638 = vmatprep.subr.bf16.mxu0 0
        %639 = vmatpush2.bf16.xpose.msra.mxu0 0
        %640 = vmatprep.mubr.bf16.mxu0 0
        %641 = vmatmul.mubr.bf16.gmra.mxu0 %v603
        %v642 = vpop.f32.mrf.mxu0
        %v643 = vadd.f32 0.0, %v642
        %v644 = vpop.f32.mrf.mxu0
        %v645 = vpop.f32.mrf.mxu0
        %v646 = vpop.f32.mrf.mxu0
        %647 = vdwg.mxu0
        %v648 = vld [vmem:[#allocation2] sm:$0xff]
        %v649 = vsel %vm369, %v643, -inf
        %650 = vmax.xlane.f32.xlu0 %v649
        %v651 = vpop.xlane.xlu0 %650
        %v652 = vmax.f32 %v648, %v651
        %v653 = vsub.f32 %v648, %v652
        %v654 = vmul.f32 %v653, 1.442695
        %v655 = vpow.pop %v654
        %657 = vset.pattern.permute.xlu0 2
        %658 = vperm.xlu0 %657, %v652
        %v659 = vpop.permute.xlu0 %658
        %v661 = vsub.f32 %v643, %v659
        %v662 = vmul.f32 %v661, 1.442695
        %v663 = vpow.pop %v662
        %v664 = vld [vmem:[#allocation3] sm:$0xff]
        %v665 = vmul.f32 %v655, %v664
        %v666 = vsel %vm369, %v663, 0.0
        %667 = vadd.xlane.f32.xlu0 %v666
        %v668 = vpop.xlane.xlu0 %667
        %v669 = vadd.f32 %v665, %v668
        %vm670 = vcmask 23568
        %671 = vst.msk [vmem:[#allocation3] sm:$0xff] %vm670, %v669
        %v672 = vld [vmem:[#allocation4] sm:$0xff]
        %674 = vset.pattern.permute.xlu0 2
        %675 = vperm.xlu0 %674, %v655
        %v676 = vpop.permute.xlu0 %675
        %v678 = vmul.f32 %v676, %v672
        %v679 = vpack.c.bf16 %v663, %v663
        %680 = vrot.lane.b32.xlu0 %v541, 96
        %v681 = vpop.permute.xlu0 %680
        %v683 = vsel %vm369, %v679, 0
        %v686 = vsel %vm404, %v681, 0
        %688 = vmatprep.subr.bf16.mxu0 0
        %689 = vmatpush1.bf16.msra.mxu0 0
        %690 = vmatprep.subr.bf16.mxu0 0
        %691 = vmatpush1.bf16.msra.mxu0 0
        %692 = vmatprep.subr.bf16.mxu0 0
        %693 = vmatpush1.bf16.msra.mxu0 0
        %694 = vmatprep.subr.bf16.mxu0 0
        %695 = vmatpush1.bf16.msra.mxu0 0
        %696 = vmatprep.subr.bf16.mxu0 0
        %697 = vmatpush1.bf16.msra.mxu0 0
        %698 = vmatprep.subr.bf16.mxu0 0
        %699 = vmatpush1.bf16.msra.mxu0 0
        %700 = vmatprep.subr.bf16.mxu0 0
        %701 = vmatpush1.bf16.msra.mxu0 0
        %702 = vmatprep.subr.bf16.mxu0 0
        %703 = vmatpush1.bf16.msra.mxu0 %v686
        %704 = vmatprep.subr.bf16.mxu0 0
        %705 = vmatpush2.bf16.msra.mxu0 0
        %706 = vmatprep.subr.bf16.mxu0 0
        %707 = vmatpush2.bf16.msra.mxu0 0
        %708 = vmatprep.subr.bf16.mxu0 0
        %709 = vmatpush2.bf16.msra.mxu0 0
        %710 = vmatprep.subr.bf16.mxu0 0
        %711 = vmatpush2.bf16.msra.mxu0 0
        %712 = vmatprep.subr.bf16.mxu0 0
        %713 = vmatpush2.bf16.msra.mxu0 0
        %714 = vmatprep.subr.bf16.mxu0 0
        %715 = vmatpush2.bf16.msra.mxu0 0
        %716 = vmatprep.subr.bf16.mxu0 0
        %717 = vmatpush2.bf16.msra.mxu0 0
        %718 = vmatprep.subr.bf16.mxu0 0
        %719 = vmatpush2.bf16.msra.mxu0 0
        %720 = vmatprep.mubr.bf16.mxu0 0
        %721 = vmatmul.mubr.bf16.gmra.mxu0 %v683
        %v722 = vpop.f32.mrf.mxu0
        %v723 = vadd.f32 0.0, %v722
        %v724 = vpop.f32.mrf.mxu0
        %v725 = vpop.f32.mrf.mxu0
        %v726 = vpop.f32.mrf.mxu0
        %727 = vdwg.mxu0
        %729 = vrot.lane.b32.xlu0 %v723, 32
        %v730 = vpop.permute.xlu0 %729
        %v732 = vadd.f32 %v678, %v730
        %vm733 = vcmask 392448
        %734 = vst.msk [vmem:[#allocation4] sm:$0xff] %vm733, %v732
        %735 = vst.msk [vmem:[#allocation2] sm:$0xff] %vm670, %v652
        %736 = vrot.lane.b32.xlu0 %v453, 80
        %v737 = vpop.permute.xlu0 %736
        %738 = vrot.lane.b32.xlu0 %v458, 80
        %v739 = vpop.permute.xlu0 %738
        %v741 = vsel %vm321, %v737, 0
        %v744 = vsel %vm321, %v739, 0
        %746 = vmatprep.subr.bf16.mxu0 0
        %747 = vmatpush1.bf16.xpose.msra.mxu0 0
        %748 = vmatprep.subr.bf16.mxu0 0
        %749 = vmatpush1.bf16.xpose.msra.mxu0 0
        %750 = vmatprep.subr.bf16.mxu0 0
        %751 = vmatpush1.bf16.xpose.msra.mxu0 0
        %752 = vmatprep.subr.bf16.mxu0 0
        %753 = vmatpush1.bf16.xpose.msra.mxu0 0
        %754 = vmatprep.subr.bf16.mxu0 0
        %755 = vmatpush1.bf16.xpose.msra.mxu0 0
        %756 = vmatprep.subr.bf16.mxu0 0
        %757 = vmatpush1.bf16.xpose.msra.mxu0 0
        %758 = vmatprep.subr.bf16.mxu0 0
        %759 = vmatpush1.bf16.xpose.msra.mxu0 0
        %760 = vmatprep.subr.bf16.mxu0 0
        %761 = vmatpush1.bf16.xpose.msra.mxu0 %v744
        %762 = vmatprep.subr.bf16.mxu0 0
        %763 = vmatpush2.bf16.xpose.msra.mxu0 0
        %764 = vmatprep.subr.bf16.mxu0 0
        %765 = vmatpush2.bf16.xpose.msra.mxu0 0
        %766 = vmatprep.subr.bf16.mxu0 0
        %767 = vmatpush2.bf16.xpose.msra.mxu0 0
        %768 = vmatprep.subr.bf16.mxu0 0
        %769 = vmatpush2.bf16.xpose.msra.mxu0 0
        %770 = vmatprep.subr.bf16.mxu0 0
        %771 = vmatpush2.bf16.xpose.msra.mxu0 0
        %772 = vmatprep.subr.bf16.mxu0 0
        %773 = vmatpush2.bf16.xpose.msra.mxu0 0
        %774 = vmatprep.subr.bf16.mxu0 0
        %775 = vmatpush2.bf16.xpose.msra.mxu0 0
        %776 = vmatprep.subr.bf16.mxu0 0
        %777 = vmatpush2.bf16.xpose.msra.mxu0 0
        %778 = vmatprep.mubr.bf16.mxu0 0
        %779 = vmatmul.mubr.bf16.gmra.mxu0 %v741
        %v780 = vpop.f32.mrf.mxu0
        %v781 = vadd.f32 0.0, %v780
        %v782 = vpop.f32.mrf.mxu0
        %v783 = vpop.f32.mrf.mxu0
        %v784 = vpop.f32.mrf.mxu0
        %785 = vdwg.mxu0
        %v786 = vld [vmem:[#allocation2] sm:$0xff]
        %v787 = vsel %vm369, %v781, -inf
        %788 = vmax.xlane.f32.xlu0 %v787
        %v789 = vpop.xlane.xlu0 %788
        %v790 = vmax.f32 %v786, %v789
        %v791 = vsub.f32 %v786, %v790
        %v792 = vmul.f32 %v791, 1.442695
        %v793 = vpow.pop %v792
        %795 = vset.pattern.permute.xlu0 3
        %796 = vperm.xlu0 %795, %v790
        %v797 = vpop.permute.xlu0 %796
        %v799 = vsub.f32 %v781, %v797
        %v800 = vmul.f32 %v799, 1.442695
        %v801 = vpow.pop %v800
        %v802 = vld [vmem:[#allocation3] sm:$0xff]
        %v803 = vmul.f32 %v793, %v802
        %v804 = vsel %vm369, %v801, 0.0
        %805 = vadd.xlane.f32.xlu0 %v804
        %v806 = vpop.xlane.xlu0 %805
        %v807 = vadd.f32 %v803, %v806
        %vm808 = vcmask 31768
        %809 = vst.msk [vmem:[#allocation3] sm:$0xff] %vm808, %v807
        %v810 = vld [vmem:[#allocation4] sm:$0xff]
        %812 = vset.pattern.permute.xlu0 3
        %813 = vperm.xlu0 %812, %v793
        %v814 = vpop.permute.xlu0 %813
        %v816 = vmul.f32 %v814, %v810
        %v817 = vpack.c.bf16 %v801, %v801
        %818 = vrot.lane.b32.xlu0 %v541, 80
        %v819 = vpop.permute.xlu0 %818
        %v821 = vsel %vm369, %v817, 0
        %v824 = vsel %vm404, %v819, 0
        %826 = vmatprep.subr.bf16.mxu0 0
        %827 = vmatpush1.bf16.msra.mxu0 0
        %828 = vmatprep.subr.bf16.mxu0 0
        %829 = vmatpush1.bf16.msra.mxu0 0
        %830 = vmatprep.subr.bf16.mxu0 0
        %831 = vmatpush1.bf16.msra.mxu0 0
        %832 = vmatprep.subr.bf16.mxu0 0
        %833 = vmatpush1.bf16.msra.mxu0 0
        %834 = vmatprep.subr.bf16.mxu0 0
        %835 = vmatpush1.bf16.msra.mxu0 0
        %836 = vmatprep.subr.bf16.mxu0 0
        %837 = vmatpush1.bf16.msra.mxu0 0
        %838 = vmatprep.subr.bf16.mxu0 0
        %839 = vmatpush1.bf16.msra.mxu0 0
        %840 = vmatprep.subr.bf16.mxu0 0
        %841 = vmatpush1.bf16.msra.mxu0 %v824
        %842 = vmatprep.subr.bf16.mxu0 0
        %843 = vmatpush2.bf16.msra.mxu0 0
        %844 = vmatprep.subr.bf16.mxu0 0
        %845 = vmatpush2.bf16.msra.mxu0 0
        %846 = vmatprep.subr.bf16.mxu0 0
        %847 = vmatpush2.bf16.msra.mxu0 0
        %848 = vmatprep.subr.bf16.mxu0 0
        %849 = vmatpush2.bf16.msra.mxu0 0
        %850 = vmatprep.subr.bf16.mxu0 0
        %851 = vmatpush2.bf16.msra.mxu0 0
        %852 = vmatprep.subr.bf16.mxu0 0
        %853 = vmatpush2.bf16.msra.mxu0 0
        %854 = vmatprep.subr.bf16.mxu0 0
        %855 = vmatpush2.bf16.msra.mxu0 0
        %856 = vmatprep.subr.bf16.mxu0 0
        %857 = vmatpush2.bf16.msra.mxu0 0
        %858 = vmatprep.mubr.bf16.mxu0 0
        %859 = vmatmul.mubr.bf16.gmra.mxu0 %v821
        %v860 = vpop.f32.mrf.mxu0
        %v861 = vadd.f32 0.0, %v860
        %v862 = vpop.f32.mrf.mxu0
        %v863 = vpop.f32.mrf.mxu0
        %v864 = vpop.f32.mrf.mxu0
        %865 = vdwg.mxu0
        %867 = vrot.lane.b32.xlu0 %v861, 48
        %v868 = vpop.permute.xlu0 %867
        %v870 = vadd.f32 %v816, %v868
        %vm871 = vcmask 523648
        %872 = vst.msk [vmem:[#allocation4] sm:$0xff] %vm871, %v870
        %873 = vst.msk [vmem:[#allocation2] sm:$0xff] %vm808, %v790
        // Predicated region
        $region45: #{attention_pallas.3} parent=39 // pred_check
          %p874 = pneg %p309
        $region46: #{attention_pallas.3} parent=39 // pred_check_branch
          %876 = sbr.rel (%p874) target = $region48
        $region47: #{attention_pallas.3} parent=39 // pred_region
          %v877 = vld [vmem:[#allocation4] sm:$0xff]
          %v878 = vld [vmem:[#allocation3] sm:$0xff]
          %880 = vset.pattern.permute.xlu0 0
          %881 = vperm.xlu0 %880, %v878
          %v882 = vpop.permute.xlu0 %881
          %v884 = vrcp.pop %v882
          %v885 = vmul.f32 %v877, %v884
          %886 = vst.msk [vmem:[#allocation4] sm:$0xff] %vm321, %v885
          %v887 = vld [vmem:[#allocation4] sm:$0xff]
          %v888 = vld [vmem:[#allocation3] sm:$0xff]
          %890 = vset.pattern.permute.xlu0 1
          %891 = vperm.xlu0 %890, %v888
          %v892 = vpop.permute.xlu0 %891
          %v894 = vrcp.pop %v892
          %v895 = vmul.f32 %v887, %v894
          %896 = vst.msk [vmem:[#allocation4] sm:$0xff] %vm595, %v895
          %v897 = vld [vmem:[#allocation4] sm:$0xff]
          %v898 = vld [vmem:[#allocation3] sm:$0xff]
          %900 = vset.pattern.permute.xlu0 2
          %901 = vperm.xlu0 %900, %v898
          %v902 = vpop.permute.xlu0 %901
          %v904 = vrcp.pop %v902
          %v905 = vmul.f32 %v897, %v904
          %906 = vst.msk [vmem:[#allocation4] sm:$0xff] %vm733, %v905
          %v907 = vld [vmem:[#allocation4] sm:$0xff]
          %v908 = vld [vmem:[#allocation3] sm:$0xff]
          %910 = vset.pattern.permute.xlu0 3
          %911 = vperm.xlu0 %910, %v908
          %v912 = vpop.permute.xlu0 %911
          %v914 = vrcp.pop %v912
          %v915 = vmul.f32 %v907, %v914
          %916 = vst.msk [vmem:[#allocation4] sm:$0xff] %vm871, %v915
          %v917 = vld [vmem:[#allocation4] sm:$0xff]
          %v918 = vpack.c.bf16 %v917, %v917
          %v919 = vld [vmem:[%s3] sm:$0xf]
          %v920 = vld [vmem:[%s3 + $0x4] sm:$0xf]
          %v921 = vld [vmem:[%s3 + $0x8] sm:$0xf]
          %v922 = vld [vmem:[%s3 + $0xc] sm:$0xf]
          %v923 = vld [vmem:[%s3 + $0x10] sm:$0xf]
          %v924 = vld [vmem:[%s3 + $0x14] sm:$0xf]
          %v925 = vld [vmem:[%s3 + $0x18] sm:$0xf]
          %v926 = vld [vmem:[%s3 + $0x1c] sm:$0xf]
          %v927 = vld [vmem:[%s4] sm:$0x1]
          %v929 = vlaneseq
          %v930 = vshrl.u32 %v929, 7
          %v931 = vsub.s32 0, %v930
          %v932 = vrot.slane %v927, %v931
          %v942 = vunpack.c.l.b16 %v919
          %v943 = vunpack.c.l.b16 %v920
          %v944 = vunpack.c.l.b16 %v921
          %v945 = vunpack.c.l.b16 %v922
          %v946 = vunpack.c.l.b16 %v923
          %v947 = vunpack.c.l.b16 %v924
          %v948 = vunpack.c.l.b16 %v925
          %v949 = vunpack.c.l.b16 %v926
          %v950 = vpack.c.b16 %v943, %v942
          %v951 = vpack.c.b16 %v945, %v944
          %v952 = vpack.c.b16 %v947, %v946
          %v953 = vpack.c.b16 %v949, %v948
          %vm958 = vcmask 523264
          %v960 = vsel %vm958, %v918, 0
          %962 = vmatprep.subr.bf16.mxu0 0
          %963 = vmatpush1.bf16.msra.mxu0 0
          %964 = vmatprep.subr.bf16.mxu0 0
          %965 = vmatpush1.bf16.msra.mxu0 0
          %966 = vmatprep.subr.bf16.mxu0 0
          %967 = vmatpush1.bf16.msra.mxu0 0
          %968 = vmatprep.subr.bf16.mxu0 0
          %969 = vmatpush1.bf16.msra.mxu0 0
          %970 = vmatprep.subr.bf16.mxu0 0
          %971 = vmatpush1.bf16.msra.mxu0 %v953
          %972 = vmatprep.subr.bf16.mxu0 0
          %973 = vmatpush1.bf16.msra.mxu0 %v952
          %974 = vmatprep.subr.bf16.mxu0 0
          %975 = vmatpush1.bf16.msra.mxu0 %v951
          %976 = vmatprep.subr.bf16.mxu0 0
          %977 = vmatpush1.bf16.msra.mxu0 %v950
          %978 = vmatprep.subr.bf16.mxu0 0
          %979 = vmatpush2.bf16.msra.mxu0 0
          %980 = vmatprep.subr.bf16.mxu0 0
          %981 = vmatpush2.bf16.msra.mxu0 0
          %982 = vmatprep.subr.bf16.mxu0 0
          %983 = vmatpush2.bf16.msra.mxu0 0
          %984 = vmatprep.subr.bf16.mxu0 0
          %985 = vmatpush2.bf16.msra.mxu0 0
          %986 = vmatprep.subr.bf16.mxu0 0
          %987 = vmatpush2.bf16.msra.mxu0 0
          %988 = vmatprep.subr.bf16.mxu0 0
          %989 = vmatpush2.bf16.msra.mxu0 0
          %990 = vmatprep.subr.bf16.mxu0 0
          %991 = vmatpush2.bf16.msra.mxu0 0
          %992 = vmatprep.subr.bf16.mxu0 0
          %993 = vmatpush2.bf16.msra.mxu0 0
          %994 = vmatprep.mubr.bf16.mxu0 0
          %995 = vmatmul.mubr.bf16.gmra.mxu0 %v960
          %v996 = vpop.f32.mrf.mxu0
          %v997 = vadd.f32 %v932, %v996
          %v998 = vpop.f32.mrf.mxu0
          %v999 = vpop.f32.mrf.mxu0
          %v1000 = vpop.f32.mrf.mxu0
          %1001 = vdwg.mxu0
          %vm1002 = vcmask 261120
          %1003 = vst.msk [vmem:[%s286] sm:$0xff] %vm1002, %v997
        $region48: #{attention_pallas.3} parent=39 // pred_fallthru
          _
        %s1004 = sand.u32 %s174, 1
        %s1005 = scalar_lea.sflag [#allocation6], %s1004
        %s1006 = sand.u32 %s174, 1
        %s1007 = smul.addr %s1006, 8
        %s1008 = scalar_lea.vmem [#allocation5], %s1007
        // Predicated region
        $region49: #{attention_pallas.3} parent=39 // pred_check
          %p1009 = pneg %p184
        $region50: #{attention_pallas.3} parent=39 // pred_check_branch
          %1011 = sbr.rel (%p1009) target = $region52
        $region51: #{attention_pallas.3} parent=39 // pred_region
          %s1013 = ssub.s32 128, 128
          %1014 = vsyncadd %s1005, %s1013
          %s1015 = sadd.s32 %s25, %s24
          %s1016 = smul.addr %s1015, 128
          %s1017 = scalar_lea.hbm %s5, %s1016
          %s1019 = sshll.u32 %s1008, 4
          %s1020 = int_to_ptr.vmem [resolvable:$true] %s1019
          %1022 = dma.vmem_to_hbm [thread:$0]  %s1020, 128, %s1017, %s1005
        $region52: #{attention_pallas.3} parent=39 // pred_fallthru
          _
      $region40: #{attention_pallas.3} parent=5 // pred_fallthru
        _
      %p1023 = scmp.le.s32.totalorder 2, %s14
      // Predicated region
      $region53: #{attention_pallas.3} parent=5 // pred_check
        %p1024 = pneg %p1023
      $region54: #{attention_pallas.3} parent=5 // pred_check_branch
        %1026 = sbr.rel (%p1024) target = $region56
      $region55: #{attention_pallas.3} parent=5 // pred_region
        %s1027 = ssub.s32 %s14, 2
        // Predicated region
        $region57: #{attention_pallas.3} parent=55 // pred_check
          %p1028 = pneg %p190
        $region58: #{attention_pallas.3} parent=55 // pred_check_branch
          %1030 = sbr.rel (%p1028) target = $region60
        $region59: #{attention_pallas.3} parent=55 // pred_region
          %s1031 = sand.u32 %s175, 1
          %s1032 = scalar_lea.sflag [#allocation6], %s1031
          %s1033 = sand.u32 %s175, 1
          %s1034 = smul.addr %s1033, 8
          %s1035 = scalar_lea.vmem [#allocation5], %s1034
          %1036 = dma.done %s1032, 128
        $region60: #{attention_pallas.3} parent=55 // pred_fallthru
          _
      $region56: #{attention_pallas.3} parent=5 // pred_fallthru
        _
    $region6: #{attention_pallas.3} parent=1 // loop_footer
      %s18 = sadd.s32 1, %s14
    $region7: #{attention_pallas.3} parent=1 // loop_footer_branch
      %13 = sbr.rel target = $region3
    $region8: #{attention_pallas.3} parent=1 // loop_exit
      _
    %1037 = vsyncpa [#allocation6], 1
    %s1038 = scalar_lea.sflag [#allocation6], 1
    %1039 = vsyncpa %s1038, 1

</llo_original>
